<compile_context>
chip_gen: v5e
topology: v5e:2x2
jax: 0.10.0
libtpu: 0.0.40
codegen_flags: <defaults>
</compile_context>

<pallas_src>
import math

import jax
import jax.numpy as jnp
from jax.experimental import pallas as pl
from jax.experimental.pallas import tpu as pltpu

IN_FEATURES = 4
OUT_FEATURES = 32

# Below this batch size the whole op is launch-overhead dominated; let XLA
# fuse the tiny GEMV + tanh instead of paying the pallas_call fixed cost.
_PALLAS_MIN_BATCH = 256
# 2048-row tiles: ~256 KiB of contiguous output DMA per grid step, ~4 MiB of
# VMEM double-buffered, and >= 2 grid steps once B >= 4096 (v7x megacore).
_TILE_B = 2048


def _repr_kernel(x_ref, wt_ref, b_ref, o_ref):
    """out[TB, 32] = tanh(x @ W.T + b) for one batch tile, natural layout.

    x_ref : [TB, 4]   batch rows, features on (4 valid) lanes
    wt_ref: [4, 32]   W.T (torch W is [out, in] = [32, 4])
    b_ref : [1, 32]
    o_ref : [TB, 32]
    """
    x = x_ref[...]
    wt = wt_ref[...]
    # K=4 contraction unrolled on the VALU; bias folded into the first term.
    y = x[:, 0:1] * wt[0:1, :] + b_ref[...]
    y = y + x[:, 1:2] * wt[1:2, :]
    y = y + x[:, 2:3] * wt[2:3, :]
    y = y + x[:, 3:4] * wt[3:4, :]
    o_ref[...] = jnp.tanh(y)  # EUP slot, overlaps the FMAs above


def representation_function(x, w, b, *, tile_b=_TILE_B):
    """x: [B, 4] f32, w: [32, 4] (torch [out, in]), b: [32] -> [B, 32] f32."""
    B, in_features = x.shape
    out_features = w.shape[0]

    # Tiny batches (typical CartPole use): fused XLA GEMV + tanh wins outright.
    if B < _PALLAS_MIN_BATCH:
        return jnp.tanh(x @ w.T + b[None, :])

    # Tile selection: one big block for moderate batches, fixed 2048-row tiles
    # (>= 2 grid steps -> megacore-usable on v7x) for large ones.
    if B <= tile_b:
        tb = max(8, ((B + 7) // 8) * 8)  # second-to-last block dim: mult. of 8
    else:
        tb = tile_b
    n_tiles = math.ceil(B / tb)
    b_pad = n_tiles * tb

    # Keep x in its natural [B, 4] layout (no transpose pass); only pad rows
    # when the batch is not already a multiple of the tile.
    x_in = x if b_pad == B else jnp.pad(x, ((0, b_pad - B), (0, 0)))
    wt = w.T                          # [4, 32], 512 bytes -> negligible
    b_row = b.reshape(1, out_features)

    out = pl.pallas_call(
        _repr_kernel,
        out_shape=jax.ShapeDtypeStruct((b_pad, out_features), jnp.float32),
        grid=(n_tiles,),
        in_specs=[
            # x: tiled along the batch axis; block is contiguous in HBM
            # (last dim == full array dim).
            pl.BlockSpec((tb, in_features), lambda i: (i, 0)),
            # W.T and bias: constant index_maps -> VMEM-resident, no re-DMA.
            pl.BlockSpec((in_features, out_features), lambda i: (0, 0)),
            pl.BlockSpec((1, out_features), lambda i: (0, 0)),
        ],
        out_specs=pl.BlockSpec((tb, out_features), lambda i: (i, 0)),
        compiler_params=pltpu.CompilerParams(
            dimension_semantics=("parallel",)),
    )(x_in, wt, b_row)

    return out if b_pad == B else out[:B]


def init_params(key, in_features=IN_FEATURES, out_features=OUT_FEATURES):
    """Deterministic init mimicking nn.Linear default (U(+/- 1/sqrt(fan_in))).

    W is stored in torch layout [out_features, in_features]; the wrapper
    transposes it once (512 bytes) before handing it to the kernel.
    """
    kw, kb = jax.random.split(key)
    bound = 1.0 / (in_features ** 0.5)
    w = jax.random.uniform(kw, (out_features, in_features), jnp.float32,
                           minval=-bound, maxval=bound)
    b = jax.random.uniform(kb, (out_features,), jnp.float32,
                           minval=-bound, maxval=bound)
    return w, b


def _reference(x, w, b):
    # Same math as torch: Linear(4, 32) -> x @ W.T + b, then Tanh.
    return jnp.tanh(x @ w.T + b[None, :])


if __name__ == "__main__":
    key = jax.random.PRNGKey(0)
    kx1, kx2, kx3, kp = jax.random.split(key, 4)
    w, b = init_params(kp)

    # Typical module use (CartPole state, batch=2) -> fused-XLA fallback path.
    x_small = jax.random.normal(kx1, (2, IN_FEATURES), jnp.float32)
    out_small = jax.block_until_ready(representation_function(x_small, w, b))
    assert out_small.shape == (2, OUT_FEATURES)
    assert jnp.allclose(out_small, _reference(x_small, w, b),
                        atol=1e-5, rtol=1e-5), "mismatch vs reference (small)"

    # Single-tile Pallas path: grid=(1,), one 1024-row block.
    x_mid = jax.random.normal(kx2, (1024, IN_FEATURES), jnp.float32)
    out_mid = jax.block_until_ready(representation_function(x_mid, w, b))
    assert out_mid.shape == (1024, OUT_FEATURES)
    assert jnp.allclose(out_mid, _reference(x_mid, w, b),
                        atol=1e-5, rtol=1e-5), "mismatch vs reference (mid)"

    # Multi-tile Pallas path with row padding: 2048-row tiles, 3 grid steps.
    x_big = jax.random.normal(kx3, (5000, IN_FEATURES), jnp.float32)
    out_big = jax.block_until_ready(representation_function(x_big, w, b))
    assert out_big.shape == (5000, OUT_FEATURES)
    assert jnp.allclose(out_big, _reference(x_big, w, b),
                        atol=1e-5, rtol=1e-5), "mismatch vs reference (big)"

    print("KERNEL_OK")
</pallas_src>

<mosaic_0001>
module attributes {stable_mosaic.version = 11 : i64} {
  func.func @_repr_kernel(%arg0: i32, %arg1: memref<1024x4xf32, #tpu.memory_space<vmem>>, %arg2: memref<4x32xf32, #tpu.memory_space<vmem>>, %arg3: memref<1x32xf32, #tpu.memory_space<vmem>>, %arg4: memref<1024x32xf32, #tpu.memory_space<vmem>>) attributes {dimension_semantics = [#tpu.dimension_semantics<parallel>], iteration_bounds = array<i64: 1>, scalar_prefetch = 0 : i64, scratch_operands = 0 : i64, tpu.core_type = #tpu.core_type<tc>, window_params = [{transform_indices = @transform_0, window_bounds = array<i64: 1024, 4>}, {pipeline_mode = #tpu.pipeline_mode<synchronous>, transform_indices = @transform_1, window_bounds = array<i64: 4, 32>}, {pipeline_mode = #tpu.pipeline_mode<synchronous>, transform_indices = @transform_2, window_bounds = array<i64: 1, 32>}, {transform_indices = @transform_3, window_bounds = array<i64: 1024, 32>}]} {
    %c0 = arith.constant 0 : index
    %c0_0 = arith.constant 0 : index
    %0 = vector.load %arg1[%c0, %c0_0] : memref<1024x4xf32, #tpu.memory_space<vmem>>, vector<1024x4xf32>
    %c0_1 = arith.constant 0 : index
    %c0_2 = arith.constant 0 : index
    %1 = vector.load %arg2[%c0_1, %c0_2] : memref<4x32xf32, #tpu.memory_space<vmem>>, vector<4x32xf32>
    %2 = vector.extract_strided_slice %0 {offsets = [0, 0], sizes = [1024, 1], strides = [1, 1]} : vector<1024x4xf32> to vector<1024x1xf32>
    %3 = vector.extract_strided_slice %1 {offsets = [0, 0], sizes = [1, 32], strides = [1, 1]} : vector<4x32xf32> to vector<1x32xf32>
    %4 = vector.broadcast %2 : vector<1024x1xf32> to vector<1024x32xf32>
    %5 = vector.broadcast %3 : vector<1x32xf32> to vector<1024x32xf32>
    %6 = arith.mulf %4, %5 : vector<1024x32xf32>
    %c0_3 = arith.constant 0 : index
    %c0_4 = arith.constant 0 : index
    %7 = vector.load %arg3[%c0_3, %c0_4] : memref<1x32xf32, #tpu.memory_space<vmem>>, vector<1x32xf32>
    %8 = vector.broadcast %7 : vector<1x32xf32> to vector<1024x32xf32>
    %9 = arith.addf %6, %8 : vector<1024x32xf32>
    %10 = vector.extract_strided_slice %0 {offsets = [0, 1], sizes = [1024, 1], strides = [1, 1]} : vector<1024x4xf32> to vector<1024x1xf32>
    %11 = vector.extract_strided_slice %1 {offsets = [1, 0], sizes = [1, 32], strides = [1, 1]} : vector<4x32xf32> to vector<1x32xf32>
    %12 = vector.broadcast %10 : vector<1024x1xf32> to vector<1024x32xf32>
    %13 = vector.broadcast %11 : vector<1x32xf32> to vector<1024x32xf32>
    %14 = arith.mulf %12, %13 : vector<1024x32xf32>
    %15 = arith.addf %9, %14 : vector<1024x32xf32>
    %16 = vector.extract_strided_slice %0 {offsets = [0, 2], sizes = [1024, 1], strides = [1, 1]} : vector<1024x4xf32> to vector<1024x1xf32>
    %17 = vector.extract_strided_slice %1 {offsets = [2, 0], sizes = [1, 32], strides = [1, 1]} : vector<4x32xf32> to vector<1x32xf32>
    %18 = vector.broadcast %16 : vector<1024x1xf32> to vector<1024x32xf32>
    %19 = vector.broadcast %17 : vector<1x32xf32> to vector<1024x32xf32>
    %20 = arith.mulf %18, %19 : vector<1024x32xf32>
    %21 = arith.addf %15, %20 : vector<1024x32xf32>
    %22 = vector.extract_strided_slice %0 {offsets = [0, 3], sizes = [1024, 1], strides = [1, 1]} : vector<1024x4xf32> to vector<1024x1xf32>
    %23 = vector.extract_strided_slice %1 {offsets = [3, 0], sizes = [1, 32], strides = [1, 1]} : vector<4x32xf32> to vector<1x32xf32>
    %24 = vector.broadcast %22 : vector<1024x1xf32> to vector<1024x32xf32>
    %25 = vector.broadcast %23 : vector<1x32xf32> to vector<1024x32xf32>
    %26 = arith.mulf %24, %25 : vector<1024x32xf32>
    %27 = arith.addf %21, %26 : vector<1024x32xf32>
    %28 = math.tanh %27 : vector<1024x32xf32>
    %c0_5 = arith.constant 0 : index
    %c0_6 = arith.constant 0 : index
    %29 = vector.load %arg4[%c0_5, %c0_6] : memref<1024x32xf32, #tpu.memory_space<vmem>>, vector<1024x32xf32>
    tpu.vector_store %arg4[%c0_5, %c0_6], %28 {strides = array<i32>} : memref<1024x32xf32, #tpu.memory_space<vmem>>, vector<1024x32xf32>,
    return
  }
  func.func @transform_0(%arg0: i32) -> (i32, i32) {
    %c0_i32 = arith.constant 0 : i32
    %c0_i32_0 = arith.constant 0 : i32
    return %arg0, %c0_i32 : i32, i32
  }
  func.func @transform_1(%arg0: i32) -> (i32, i32) {
    %c0_i32 = arith.constant 0 : i32
    %c0_i32_0 = arith.constant 0 : i32
    %c0_i32_1 = arith.constant 0 : i32
    return %c0_i32, %c0_i32_0 : i32, i32
  }
  func.func @transform_2(%arg0: i32) -> (i32, i32) {
    %c0_i32 = arith.constant 0 : i32
    %c0_i32_0 = arith.constant 0 : i32
    %c0_i32_1 = arith.constant 0 : i32
    return %c0_i32, %c0_i32_0 : i32, i32
  }
  func.func @transform_3(%arg0: i32) -> (i32, i32) {
    %c0_i32 = arith.constant 0 : i32
    %c0_i32_0 = arith.constant 0 : i32
    return %arg0, %c0_i32 : i32, i32
  }
}

</mosaic_0001>

<llo_original>
// kernel: tpu_custom_call.1
$region0: #{tpu_custom_call.1}
  #allocation0 [shape = 'u32[]', space=smem, size = 0x4, offset = 0x4, fixed_abs, tag = 'smem constant byte address 0x4 - core index']
  #allocation1 [shape = 'u32[72,128]{1,0:T(1,128)}', space=vmem, size = 0x9000, scoped, tag = 'internal scratch']
  %s0 = inlined_call_operand.vmem [shape: f32[1024,4], index: 0, kind: input, shape index: {}]
  %s1 = inlined_call_operand.vmem [shape: f32[4,32], index: 1, kind: input, shape index: {}]
  %s2 = inlined_call_operand.vmem [shape: f32[1,32], index: 2, kind: input, shape index: {}]
  %s3 = inlined_call_operand.vmem [shape: f32[1024,32], index: 3, kind: output, shape index: {}]
  %s4 = sld [smem:[#allocation0]]
  $region22: #{tpu_custom_call.1} parent=0
    _
  %s6 = ssub.s32 1, %s4
  %s7 = scalar_select 0, %s6, %s4
  // Predicated region
  $region2: #{tpu_custom_call.1} parent=0 // pred_check
    _
  $region3: #{tpu_custom_call.1} parent=0 // pred_check_branch
    %9 = sbr.rel (0) target = $region5
  $region4: #{tpu_custom_call.1} parent=0 // pred_region
    _
  $region5: #{tpu_custom_call.1} parent=0 // pred_fallthru
    _
  // Predicated region
  $region6: #{tpu_custom_call.1} parent=0 // pred_check
    _
  $region7: #{tpu_custom_call.1} parent=0 // pred_check_branch
    %11 = sbr.rel (0) target = $region9
  $region8: #{tpu_custom_call.1} parent=0 // pred_region
    _
  $region9: #{tpu_custom_call.1} parent=0 // pred_fallthru
    _
  // Predicated region
  $region10: #{tpu_custom_call.1} parent=0 // pred_check
    _
  $region11: #{tpu_custom_call.1} parent=0 // pred_check_branch
    %13 = sbr.rel (0) target = $region13
  $region12: #{tpu_custom_call.1} parent=0 // pred_region
    _
  $region13: #{tpu_custom_call.1} parent=0 // pred_fallthru
    _
  %v14 = vld [vmem:[%s0] sm:$0xff]
  %v15 = vld [vmem:[%s0 + $0x8] sm:$0xff]
  %v16 = vld [vmem:[%s0 + $0x10] sm:$0xff]
  %v17 = vld [vmem:[%s0 + $0x18] sm:$0xff]
  %v18 = vld [vmem:[%s0 + $0x20] sm:$0xff]
  %v19 = vld [vmem:[%s0 + $0x28] sm:$0xff]
  %v20 = vld [vmem:[%s0 + $0x30] sm:$0xff]
  %v21 = vld [vmem:[%s0 + $0x38] sm:$0xff]
  %v22 = vld [vmem:[%s0 + $0x40] sm:$0xff]
  %v23 = vld [vmem:[%s0 + $0x48] sm:$0xff]
  %v24 = vld [vmem:[%s0 + $0x50] sm:$0xff]
  %v25 = vld [vmem:[%s0 + $0x58] sm:$0xff]
  %v26 = vld [vmem:[%s0 + $0x60] sm:$0xff]
  %v27 = vld [vmem:[%s0 + $0x68] sm:$0xff]
  %v28 = vld [vmem:[%s0 + $0x70] sm:$0xff]
  %v29 = vld [vmem:[%s0 + $0x78] sm:$0xff]
  %v30 = vld [vmem:[%s0 + $0x80] sm:$0xff]
  %v31 = vld [vmem:[%s0 + $0x88] sm:$0xff]
  %v32 = vld [vmem:[%s0 + $0x90] sm:$0xff]
  %v33 = vld [vmem:[%s0 + $0x98] sm:$0xff]
  %v34 = vld [vmem:[%s0 + $0xa0] sm:$0xff]
  %v35 = vld [vmem:[%s0 + $0xa8] sm:$0xff]
  %v36 = vld [vmem:[%s0 + $0xb0] sm:$0xff]
  %v37 = vld [vmem:[%s0 + $0xb8] sm:$0xff]
  %v38 = vld [vmem:[%s0 + $0xc0] sm:$0xff]
  %v39 = vld [vmem:[%s0 + $0xc8] sm:$0xff]
  %v40 = vld [vmem:[%s0 + $0xd0] sm:$0xff]
  %v41 = vld [vmem:[%s0 + $0xd8] sm:$0xff]
  %v42 = vld [vmem:[%s0 + $0xe0] sm:$0xff]
  %v43 = vld [vmem:[%s0 + $0xe8] sm:$0xff]
  %v44 = vld [vmem:[%s0 + $0xf0] sm:$0xff]
  %v45 = vld [vmem:[%s0 + $0xf8] sm:$0xff]
  %v46 = vld [vmem:[%s0 + $0x100] sm:$0xff]
  %v47 = vld [vmem:[%s0 + $0x108] sm:$0xff]
  %v48 = vld [vmem:[%s0 + $0x110] sm:$0xff]
  %v49 = vld [vmem:[%s0 + $0x118] sm:$0xff]
  %v50 = vld [vmem:[%s0 + $0x120] sm:$0xff]
  %v51 = vld [vmem:[%s0 + $0x128] sm:$0xff]
  %v52 = vld [vmem:[%s0 + $0x130] sm:$0xff]
  %v53 = vld [vmem:[%s0 + $0x138] sm:$0xff]
  %v54 = vld [vmem:[%s0 + $0x140] sm:$0xff]
  %v55 = vld [vmem:[%s0 + $0x148] sm:$0xff]
  %v56 = vld [vmem:[%s0 + $0x150] sm:$0xff]
  %v57 = vld [vmem:[%s0 + $0x158] sm:$0xff]
  %v58 = vld [vmem:[%s0 + $0x160] sm:$0xff]
  %v59 = vld [vmem:[%s0 + $0x168] sm:$0xff]
  %v60 = vld [vmem:[%s0 + $0x170] sm:$0xff]
  %v61 = vld [vmem:[%s0 + $0x178] sm:$0xff]
  %v62 = vld [vmem:[%s0 + $0x180] sm:$0xff]
  %v63 = vld [vmem:[%s0 + $0x188] sm:$0xff]
  %v64 = vld [vmem:[%s0 + $0x190] sm:$0xff]
  %v65 = vld [vmem:[%s0 + $0x198] sm:$0xff]
  %v66 = vld [vmem:[%s0 + $0x1a0] sm:$0xff]
  %v67 = vld [vmem:[%s0 + $0x1a8] sm:$0xff]
  %v68 = vld [vmem:[%s0 + $0x1b0] sm:$0xff]
  %v69 = vld [vmem:[%s0 + $0x1b8] sm:$0xff]
  %v70 = vld [vmem:[%s0 + $0x1c0] sm:$0xff]
  %v71 = vld [vmem:[%s0 + $0x1c8] sm:$0xff]
  %v72 = vld [vmem:[%s0 + $0x1d0] sm:$0xff]
  %v73 = vld [vmem:[%s0 + $0x1d8] sm:$0xff]
  %v74 = vld [vmem:[%s0 + $0x1e0] sm:$0xff]
  %v75 = vld [vmem:[%s0 + $0x1e8] sm:$0xff]
  %v76 = vld [vmem:[%s0 + $0x1f0] sm:$0xff]
  %v77 = vld [vmem:[%s0 + $0x1f8] sm:$0xff]
  %v78 = vld [vmem:[%s0 + $0x200] sm:$0xff]
  %v79 = vld [vmem:[%s0 + $0x208] sm:$0xff]
  %v80 = vld [vmem:[%s0 + $0x210] sm:$0xff]
  %v81 = vld [vmem:[%s0 + $0x218] sm:$0xff]
  %v82 = vld [vmem:[%s0 + $0x220] sm:$0xff]
  %v83 = vld [vmem:[%s0 + $0x228] sm:$0xff]
  %v84 = vld [vmem:[%s0 + $0x230] sm:$0xff]
  %v85 = vld [vmem:[%s0 + $0x238] sm:$0xff]
  %v86 = vld [vmem:[%s0 + $0x240] sm:$0xff]
  %v87 = vld [vmem:[%s0 + $0x248] sm:$0xff]
  %v88 = vld [vmem:[%s0 + $0x250] sm:$0xff]
  %v89 = vld [vmem:[%s0 + $0x258] sm:$0xff]
  %v90 = vld [vmem:[%s0 + $0x260] sm:$0xff]
  %v91 = vld [vmem:[%s0 + $0x268] sm:$0xff]
  %v92 = vld [vmem:[%s0 + $0x270] sm:$0xff]
  %v93 = vld [vmem:[%s0 + $0x278] sm:$0xff]
  %v94 = vld [vmem:[%s0 + $0x280] sm:$0xff]
  %v95 = vld [vmem:[%s0 + $0x288] sm:$0xff]
  %v96 = vld [vmem:[%s0 + $0x290] sm:$0xff]
  %v97 = vld [vmem:[%s0 + $0x298] sm:$0xff]
  %v98 = vld [vmem:[%s0 + $0x2a0] sm:$0xff]
  %v99 = vld [vmem:[%s0 + $0x2a8] sm:$0xff]
  %v100 = vld [vmem:[%s0 + $0x2b0] sm:$0xff]
  %v101 = vld [vmem:[%s0 + $0x2b8] sm:$0xff]
  %v102 = vld [vmem:[%s0 + $0x2c0] sm:$0xff]
  %v103 = vld [vmem:[%s0 + $0x2c8] sm:$0xff]
  %v104 = vld [vmem:[%s0 + $0x2d0] sm:$0xff]
  %v105 = vld [vmem:[%s0 + $0x2d8] sm:$0xff]
  %v106 = vld [vmem:[%s0 + $0x2e0] sm:$0xff]
  %v107 = vld [vmem:[%s0 + $0x2e8] sm:$0xff]
  %v108 = vld [vmem:[%s0 + $0x2f0] sm:$0xff]
  %v109 = vld [vmem:[%s0 + $0x2f8] sm:$0xff]
  %v110 = vld [vmem:[%s0 + $0x300] sm:$0xff]
  %v111 = vld [vmem:[%s0 + $0x308] sm:$0xff]
  %v112 = vld [vmem:[%s0 + $0x310] sm:$0xff]
  %v113 = vld [vmem:[%s0 + $0x318] sm:$0xff]
  %v114 = vld [vmem:[%s0 + $0x320] sm:$0xff]
  %v115 = vld [vmem:[%s0 + $0x328] sm:$0xff]
  %v116 = vld [vmem:[%s0 + $0x330] sm:$0xff]
  %v117 = vld [vmem:[%s0 + $0x338] sm:$0xff]
  %v118 = vld [vmem:[%s0 + $0x340] sm:$0xff]
  %v119 = vld [vmem:[%s0 + $0x348] sm:$0xff]
  %v120 = vld [vmem:[%s0 + $0x350] sm:$0xff]
  %v121 = vld [vmem:[%s0 + $0x358] sm:$0xff]
  %v122 = vld [vmem:[%s0 + $0x360] sm:$0xff]
  %v123 = vld [vmem:[%s0 + $0x368] sm:$0xff]
  %v124 = vld [vmem:[%s0 + $0x370] sm:$0xff]
  %v125 = vld [vmem:[%s0 + $0x378] sm:$0xff]
  %v126 = vld [vmem:[%s0 + $0x380] sm:$0xff]
  %v127 = vld [vmem:[%s0 + $0x388] sm:$0xff]
  %v128 = vld [vmem:[%s0 + $0x390] sm:$0xff]
  %v129 = vld [vmem:[%s0 + $0x398] sm:$0xff]
  %v130 = vld [vmem:[%s0 + $0x3a0] sm:$0xff]
  %v131 = vld [vmem:[%s0 + $0x3a8] sm:$0xff]
  %v132 = vld [vmem:[%s0 + $0x3b0] sm:$0xff]
  %v133 = vld [vmem:[%s0 + $0x3b8] sm:$0xff]
  %v134 = vld [vmem:[%s0 + $0x3c0] sm:$0xff]
  %v135 = vld [vmem:[%s0 + $0x3c8] sm:$0xff]
  %v136 = vld [vmem:[%s0 + $0x3d0] sm:$0xff]
  %v137 = vld [vmem:[%s0 + $0x3d8] sm:$0xff]
  %v138 = vld [vmem:[%s0 + $0x3e0] sm:$0xff]
  %v139 = vld [vmem:[%s0 + $0x3e8] sm:$0xff]
  %v140 = vld [vmem:[%s0 + $0x3f0] sm:$0xff]
  %v141 = vld [vmem:[%s0 + $0x3f8] sm:$0xff]
  %v142 = vld [vmem:[%s1] sm:$0xf]
  %144 = vset.pattern.permute.xlu0 0
  %145 = vperm.xlu0 %144, %v14
  %v146 = vpop.permute.xlu0 %145
  %149 = vset.pattern.permute.xlu0 0
  %150 = vperm.xlu0 %149, %v15
  %v151 = vpop.permute.xlu0 %150
  %154 = vset.pattern.permute.xlu0 0
  %155 = vperm.xlu0 %154, %v16
  %v156 = vpop.permute.xlu0 %155
  %159 = vset.pattern.permute.xlu0 0
  %160 = vperm.xlu0 %159, %v17
  %v161 = vpop.permute.xlu0 %160
  %164 = vset.pattern.permute.xlu0 0
  %165 = vperm.xlu0 %164, %v18
  %v166 = vpop.permute.xlu0 %165
  %169 = vset.pattern.permute.xlu0 0
  %170 = vperm.xlu0 %169, %v19
  %v171 = vpop.permute.xlu0 %170
  %174 = vset.pattern.permute.xlu0 0
  %175 = vperm.xlu0 %174, %v20
  %v176 = vpop.permute.xlu0 %175
  %179 = vset.pattern.permute.xlu0 0
  %180 = vperm.xlu0 %179, %v21
  %v181 = vpop.permute.xlu0 %180
  %184 = vset.pattern.permute.xlu0 0
  %185 = vperm.xlu0 %184, %v22
  %v186 = vpop.permute.xlu0 %185
  %189 = vset.pattern.permute.xlu0 0
  %190 = vperm.xlu0 %189, %v23
  %v191 = vpop.permute.xlu0 %190
  %194 = vset.pattern.permute.xlu0 0
  %195 = vperm.xlu0 %194, %v24
  %v196 = vpop.permute.xlu0 %195
  %199 = vset.pattern.permute.xlu0 0
  %200 = vperm.xlu0 %199, %v25
  %v201 = vpop.permute.xlu0 %200
  %204 = vset.pattern.permute.xlu0 0
  %205 = vperm.xlu0 %204, %v26
  %v206 = vpop.permute.xlu0 %205
  %209 = vset.pattern.permute.xlu0 0
  %210 = vperm.xlu0 %209, %v27
  %v211 = vpop.permute.xlu0 %210
  %214 = vset.pattern.permute.xlu0 0
  %215 = vperm.xlu0 %214, %v28
  %v216 = vpop.permute.xlu0 %215
  %219 = vset.pattern.permute.xlu0 0
  %220 = vperm.xlu0 %219, %v29
  %v221 = vpop.permute.xlu0 %220
  %224 = vset.pattern.permute.xlu0 0
  %225 = vperm.xlu0 %224, %v30
  %v226 = vpop.permute.xlu0 %225
  %229 = vset.pattern.permute.xlu0 0
  %230 = vperm.xlu0 %229, %v31
  %v231 = vpop.permute.xlu0 %230
  %234 = vset.pattern.permute.xlu0 0
  %235 = vperm.xlu0 %234, %v32
  %v236 = vpop.permute.xlu0 %235
  %239 = vset.pattern.permute.xlu0 0
  %240 = vperm.xlu0 %239, %v33
  %v241 = vpop.permute.xlu0 %240
  %244 = vset.pattern.permute.xlu0 0
  %245 = vperm.xlu0 %244, %v34
  %v246 = vpop.permute.xlu0 %245
  %249 = vset.pattern.permute.xlu0 0
  %250 = vperm.xlu0 %249, %v35
  %v251 = vpop.permute.xlu0 %250
  %254 = vset.pattern.permute.xlu0 0
  %255 = vperm.xlu0 %254, %v36
  %v256 = vpop.permute.xlu0 %255
  %259 = vset.pattern.permute.xlu0 0
  %260 = vperm.xlu0 %259, %v37
  %v261 = vpop.permute.xlu0 %260
  %264 = vset.pattern.permute.xlu0 0
  %265 = vperm.xlu0 %264, %v38
  %v266 = vpop.permute.xlu0 %265
  %269 = vset.pattern.permute.xlu0 0
  %270 = vperm.xlu0 %269, %v39
  %v271 = vpop.permute.xlu0 %270
  %274 = vset.pattern.permute.xlu0 0
  %275 = vperm.xlu0 %274, %v40
  %v276 = vpop.permute.xlu0 %275
  %279 = vset.pattern.permute.xlu0 0
  %280 = vperm.xlu0 %279, %v41
  %v281 = vpop.permute.xlu0 %280
  %284 = vset.pattern.permute.xlu0 0
  %285 = vperm.xlu0 %284, %v42
  %v286 = vpop.permute.xlu0 %285
  %289 = vset.pattern.permute.xlu0 0
  %290 = vperm.xlu0 %289, %v43
  %v291 = vpop.permute.xlu0 %290
  %294 = vset.pattern.permute.xlu0 0
  %295 = vperm.xlu0 %294, %v44
  %v296 = vpop.permute.xlu0 %295
  %299 = vset.pattern.permute.xlu0 0
  %300 = vperm.xlu0 %299, %v45
  %v301 = vpop.permute.xlu0 %300
  %304 = vset.pattern.permute.xlu0 0
  %305 = vperm.xlu0 %304, %v46
  %v306 = vpop.permute.xlu0 %305
  %309 = vset.pattern.permute.xlu0 0
  %310 = vperm.xlu0 %309, %v47
  %v311 = vpop.permute.xlu0 %310
  %314 = vset.pattern.permute.xlu0 0
  %315 = vperm.xlu0 %314, %v48
  %v316 = vpop.permute.xlu0 %315
  %319 = vset.pattern.permute.xlu0 0
  %320 = vperm.xlu0 %319, %v49
  %v321 = vpop.permute.xlu0 %320
  %324 = vset.pattern.permute.xlu0 0
  %325 = vperm.xlu0 %324, %v50
  %v326 = vpop.permute.xlu0 %325
  %329 = vset.pattern.permute.xlu0 0
  %330 = vperm.xlu0 %329, %v51
  %v331 = vpop.permute.xlu0 %330
  %334 = vset.pattern.permute.xlu0 0
  %335 = vperm.xlu0 %334, %v52
  %v336 = vpop.permute.xlu0 %335
  %339 = vset.pattern.permute.xlu0 0
  %340 = vperm.xlu0 %339, %v53
  %v341 = vpop.permute.xlu0 %340
  %344 = vset.pattern.permute.xlu0 0
  %345 = vperm.xlu0 %344, %v54
  %v346 = vpop.permute.xlu0 %345
  %349 = vset.pattern.permute.xlu0 0
  %350 = vperm.xlu0 %349, %v55
  %v351 = vpop.permute.xlu0 %350
  %354 = vset.pattern.permute.xlu0 0
  %355 = vperm.xlu0 %354, %v56
  %v356 = vpop.permute.xlu0 %355
  %359 = vset.pattern.permute.xlu0 0
  %360 = vperm.xlu0 %359, %v57
  %v361 = vpop.permute.xlu0 %360
  %364 = vset.pattern.permute.xlu0 0
  %365 = vperm.xlu0 %364, %v58
  %v366 = vpop.permute.xlu0 %365
  %369 = vset.pattern.permute.xlu0 0
  %370 = vperm.xlu0 %369, %v59
  %v371 = vpop.permute.xlu0 %370
  %374 = vset.pattern.permute.xlu0 0
  %375 = vperm.xlu0 %374, %v60
  %v376 = vpop.permute.xlu0 %375
  %379 = vset.pattern.permute.xlu0 0
  %380 = vperm.xlu0 %379, %v61
  %v381 = vpop.permute.xlu0 %380
  %384 = vset.pattern.permute.xlu0 0
  %385 = vperm.xlu0 %384, %v62
  %v386 = vpop.permute.xlu0 %385
  %389 = vset.pattern.permute.xlu0 0
  %390 = vperm.xlu0 %389, %v63
  %v391 = vpop.permute.xlu0 %390
  %394 = vset.pattern.permute.xlu0 0
  %395 = vperm.xlu0 %394, %v64
  %v396 = vpop.permute.xlu0 %395
  %399 = vset.pattern.permute.xlu0 0
  %400 = vperm.xlu0 %399, %v65
  %v401 = vpop.permute.xlu0 %400
  %404 = vset.pattern.permute.xlu0 0
  %405 = vperm.xlu0 %404, %v66
  %v406 = vpop.permute.xlu0 %405
  %409 = vset.pattern.permute.xlu0 0
  %410 = vperm.xlu0 %409, %v67
  %v411 = vpop.permute.xlu0 %410
  %414 = vset.pattern.permute.xlu0 0
  %415 = vperm.xlu0 %414, %v68
  %v416 = vpop.permute.xlu0 %415
  %419 = vset.pattern.permute.xlu0 0
  %420 = vperm.xlu0 %419, %v69
  %v421 = vpop.permute.xlu0 %420
  %424 = vset.pattern.permute.xlu0 0
  %425 = vperm.xlu0 %424, %v70
  %v426 = vpop.permute.xlu0 %425
  %429 = vset.pattern.permute.xlu0 0
  %430 = vperm.xlu0 %429, %v71
  %v431 = vpop.permute.xlu0 %430
  %434 = vset.pattern.permute.xlu0 0
  %435 = vperm.xlu0 %434, %v72
  %v436 = vpop.permute.xlu0 %435
  %439 = vset.pattern.permute.xlu0 0
  %440 = vperm.xlu0 %439, %v73
  %v441 = vpop.permute.xlu0 %440
  %444 = vset.pattern.permute.xlu0 0
  %445 = vperm.xlu0 %444, %v74
  %v446 = vpop.permute.xlu0 %445
  %449 = vset.pattern.permute.xlu0 0
  %450 = vperm.xlu0 %449, %v75
  %v451 = vpop.permute.xlu0 %450
  %454 = vset.pattern.permute.xlu0 0
  %455 = vperm.xlu0 %454, %v76
  %v456 = vpop.permute.xlu0 %455
  %459 = vset.pattern.permute.xlu0 0
  %460 = vperm.xlu0 %459, %v77
  %v461 = vpop.permute.xlu0 %460
  %464 = vset.pattern.permute.xlu0 0
  %465 = vperm.xlu0 %464, %v78
  %v466 = vpop.permute.xlu0 %465
  %469 = vset.pattern.permute.xlu0 0
  %470 = vperm.xlu0 %469, %v79
  %v471 = vpop.permute.xlu0 %470
  %474 = vset.pattern.permute.xlu0 0
  %475 = vperm.xlu0 %474, %v80
  %v476 = vpop.permute.xlu0 %475
  %479 = vset.pattern.permute.xlu0 0
  %480 = vperm.xlu0 %479, %v81
  %v481 = vpop.permute.xlu0 %480
  %484 = vset.pattern.permute.xlu0 0
  %485 = vperm.xlu0 %484, %v82
  %v486 = vpop.permute.xlu0 %485
  %489 = vset.pattern.permute.xlu0 0
  %490 = vperm.xlu0 %489, %v83
  %v491 = vpop.permute.xlu0 %490
  %494 = vset.pattern.permute.xlu0 0
  %495 = vperm.xlu0 %494, %v84
  %v496 = vpop.permute.xlu0 %495
  %499 = vset.pattern.permute.xlu0 0
  %500 = vperm.xlu0 %499, %v85
  %v501 = vpop.permute.xlu0 %500
  %504 = vset.pattern.permute.xlu0 0
  %505 = vperm.xlu0 %504, %v86
  %v506 = vpop.permute.xlu0 %505
  %509 = vset.pattern.permute.xlu0 0
  %510 = vperm.xlu0 %509, %v87
  %v511 = vpop.permute.xlu0 %510
  %514 = vset.pattern.permute.xlu0 0
  %515 = vperm.xlu0 %514, %v88
  %v516 = vpop.permute.xlu0 %515
  %519 = vset.pattern.permute.xlu0 0
  %520 = vperm.xlu0 %519, %v89
  %v521 = vpop.permute.xlu0 %520
  %524 = vset.pattern.permute.xlu0 0
  %525 = vperm.xlu0 %524, %v90
  %v526 = vpop.permute.xlu0 %525
  %529 = vset.pattern.permute.xlu0 0
  %530 = vperm.xlu0 %529, %v91
  %v531 = vpop.permute.xlu0 %530
  %534 = vset.pattern.permute.xlu0 0
  %535 = vperm.xlu0 %534, %v92
  %v536 = vpop.permute.xlu0 %535
  %539 = vset.pattern.permute.xlu0 0
  %540 = vperm.xlu0 %539, %v93
  %v541 = vpop.permute.xlu0 %540
  %544 = vset.pattern.permute.xlu0 0
  %545 = vperm.xlu0 %544, %v94
  %v546 = vpop.permute.xlu0 %545
  %549 = vset.pattern.permute.xlu0 0
  %550 = vperm.xlu0 %549, %v95
  %v551 = vpop.permute.xlu0 %550
  %554 = vset.pattern.permute.xlu0 0
  %555 = vperm.xlu0 %554, %v96
  %v556 = vpop.permute.xlu0 %555
  %559 = vset.pattern.permute.xlu0 0
  %560 = vperm.xlu0 %559, %v97
  %v561 = vpop.permute.xlu0 %560
  %564 = vset.pattern.permute.xlu0 0
  %565 = vperm.xlu0 %564, %v98
  %v566 = vpop.permute.xlu0 %565
  %569 = vset.pattern.permute.xlu0 0
  %570 = vperm.xlu0 %569, %v99
  %v571 = vpop.permute.xlu0 %570
  %574 = vset.pattern.permute.xlu0 0
  %575 = vperm.xlu0 %574, %v100
  %v576 = vpop.permute.xlu0 %575
  %579 = vset.pattern.permute.xlu0 0
  %580 = vperm.xlu0 %579, %v101
  %v581 = vpop.permute.xlu0 %580
  %584 = vset.pattern.permute.xlu0 0
  %585 = vperm.xlu0 %584, %v102
  %v586 = vpop.permute.xlu0 %585
  %589 = vset.pattern.permute.xlu0 0
  %590 = vperm.xlu0 %589, %v103
  %v591 = vpop.permute.xlu0 %590
  %594 = vset.pattern.permute.xlu0 0
  %595 = vperm.xlu0 %594, %v104
  %v596 = vpop.permute.xlu0 %595
  %599 = vset.pattern.permute.xlu0 0
  %600 = vperm.xlu0 %599, %v105
  %v601 = vpop.permute.xlu0 %600
  %604 = vset.pattern.permute.xlu0 0
  %605 = vperm.xlu0 %604, %v106
  %v606 = vpop.permute.xlu0 %605
  %609 = vset.pattern.permute.xlu0 0
  %610 = vperm.xlu0 %609, %v107
  %v611 = vpop.permute.xlu0 %610
  %614 = vset.pattern.permute.xlu0 0
  %615 = vperm.xlu0 %614, %v108
  %v616 = vpop.permute.xlu0 %615
  %619 = vset.pattern.permute.xlu0 0
  %620 = vperm.xlu0 %619, %v109
  %v621 = vpop.permute.xlu0 %620
  %624 = vset.pattern.permute.xlu0 0
  %625 = vperm.xlu0 %624, %v110
  %v626 = vpop.permute.xlu0 %625
  %629 = vset.pattern.permute.xlu0 0
  %630 = vperm.xlu0 %629, %v111
  %v631 = vpop.permute.xlu0 %630
  %634 = vset.pattern.permute.xlu0 0
  %635 = vperm.xlu0 %634, %v112
  %v636 = vpop.permute.xlu0 %635
  %639 = vset.pattern.permute.xlu0 0
  %640 = vperm.xlu0 %639, %v113
  %v641 = vpop.permute.xlu0 %640
  %644 = vset.pattern.permute.xlu0 0
  %645 = vperm.xlu0 %644, %v114
  %v646 = vpop.permute.xlu0 %645
  %649 = vset.pattern.permute.xlu0 0
  %650 = vperm.xlu0 %649, %v115
  %v651 = vpop.permute.xlu0 %650
  %654 = vset.pattern.permute.xlu0 0
  %655 = vperm.xlu0 %654, %v116
  %v656 = vpop.permute.xlu0 %655
  %659 = vset.pattern.permute.xlu0 0
  %660 = vperm.xlu0 %659, %v117
  %v661 = vpop.permute.xlu0 %660
  %664 = vset.pattern.permute.xlu0 0
  %665 = vperm.xlu0 %664, %v118
  %v666 = vpop.permute.xlu0 %665
  %669 = vset.pattern.permute.xlu0 0
  %670 = vperm.xlu0 %669, %v119
  %v671 = vpop.permute.xlu0 %670
  %674 = vset.pattern.permute.xlu0 0
  %675 = vperm.xlu0 %674, %v120
  %v676 = vpop.permute.xlu0 %675
  %679 = vset.pattern.permute.xlu0 0
  %680 = vperm.xlu0 %679, %v121
  %v681 = vpop.permute.xlu0 %680
  %684 = vset.pattern.permute.xlu0 0
  %685 = vperm.xlu0 %684, %v122
  %v686 = vpop.permute.xlu0 %685
  %689 = vset.pattern.permute.xlu0 0
  %690 = vperm.xlu0 %689, %v123
  %v691 = vpop.permute.xlu0 %690
  %694 = vset.pattern.permute.xlu0 0
  %695 = vperm.xlu0 %694, %v124
  %v696 = vpop.permute.xlu0 %695
  %699 = vset.pattern.permute.xlu0 0
  %700 = vperm.xlu0 %699, %v125
  %v701 = vpop.permute.xlu0 %700
  %704 = vset.pattern.permute.xlu0 0
  %705 = vperm.xlu0 %704, %v126
  %v706 = vpop.permute.xlu0 %705
  %709 = vset.pattern.permute.xlu0 0
  %710 = vperm.xlu0 %709, %v127
  %v711 = vpop.permute.xlu0 %710
  %714 = vset.pattern.permute.xlu0 0
  %715 = vperm.xlu0 %714, %v128
  %v716 = vpop.permute.xlu0 %715
  %719 = vset.pattern.permute.xlu0 0
  %720 = vperm.xlu0 %719, %v129
  %v721 = vpop.permute.xlu0 %720
  %724 = vset.pattern.permute.xlu0 0
  %725 = vperm.xlu0 %724, %v130
  %v726 = vpop.permute.xlu0 %725
  %729 = vset.pattern.permute.xlu0 0
  %730 = vperm.xlu0 %729, %v131
  %v731 = vpop.permute.xlu0 %730
  %734 = vset.pattern.permute.xlu0 0
  %735 = vperm.xlu0 %734, %v132
  %v736 = vpop.permute.xlu0 %735
  %739 = vset.pattern.permute.xlu0 0
  %740 = vperm.xlu0 %739, %v133
  %v741 = vpop.permute.xlu0 %740
  %744 = vset.pattern.permute.xlu0 0
  %745 = vperm.xlu0 %744, %v134
  %v746 = vpop.permute.xlu0 %745
  %749 = vset.pattern.permute.xlu0 0
  %750 = vperm.xlu0 %749, %v135
  %v751 = vpop.permute.xlu0 %750
  %754 = vset.pattern.permute.xlu0 0
  %755 = vperm.xlu0 %754, %v136
  %v756 = vpop.permute.xlu0 %755
  %759 = vset.pattern.permute.xlu0 0
  %760 = vperm.xlu0 %759, %v137
  %v761 = vpop.permute.xlu0 %760
  %764 = vset.pattern.permute.xlu0 0
  %765 = vperm.xlu0 %764, %v138
  %v766 = vpop.permute.xlu0 %765
  %769 = vset.pattern.permute.xlu0 0
  %770 = vperm.xlu0 %769, %v139
  %v771 = vpop.permute.xlu0 %770
  %774 = vset.pattern.permute.xlu0 0
  %775 = vperm.xlu0 %774, %v140
  %v776 = vpop.permute.xlu0 %775
  %779 = vset.pattern.permute.xlu0 0
  %780 = vperm.xlu0 %779, %v141
  %v781 = vpop.permute.xlu0 %780
  %v783 = vperm.slane %v142, 0
  %v784 = vmul.f32 %v146, %v783
  %v785 = vmul.f32 %v151, %v783
  %v786 = vmul.f32 %v156, %v783
  %v787 = vmul.f32 %v161, %v783
  %v788 = vmul.f32 %v166, %v783
  %v789 = vmul.f32 %v171, %v783
  %v790 = vmul.f32 %v176, %v783
  %v791 = vmul.f32 %v181, %v783
  %v792 = vmul.f32 %v186, %v783
  %v793 = vmul.f32 %v191, %v783
  %v794 = vmul.f32 %v196, %v783
  %v795 = vmul.f32 %v201, %v783
  %v796 = vmul.f32 %v206, %v783
  %v797 = vmul.f32 %v211, %v783
  %v798 = vmul.f32 %v216, %v783
  %v799 = vmul.f32 %v221, %v783
  %v800 = vmul.f32 %v226, %v783
  %v801 = vmul.f32 %v231, %v783
  %v802 = vmul.f32 %v236, %v783
  %v803 = vmul.f32 %v241, %v783
  %v804 = vmul.f32 %v246, %v783
  %v805 = vmul.f32 %v251, %v783
  %v806 = vmul.f32 %v256, %v783
  %v807 = vmul.f32 %v261, %v783
  %v808 = vmul.f32 %v266, %v783
  %v809 = vmul.f32 %v271, %v783
  %v810 = vmul.f32 %v276, %v783
  %v811 = vmul.f32 %v281, %v783
  %v812 = vmul.f32 %v286, %v783
  %v813 = vmul.f32 %v291, %v783
  %v814 = vmul.f32 %v296, %v783
  %v815 = vmul.f32 %v301, %v783
  %v816 = vmul.f32 %v306, %v783
  %v817 = vmul.f32 %v311, %v783
  %v818 = vmul.f32 %v316, %v783
  %v819 = vmul.f32 %v321, %v783
  %v820 = vmul.f32 %v326, %v783
  %v821 = vmul.f32 %v331, %v783
  %v822 = vmul.f32 %v336, %v783
  %v823 = vmul.f32 %v341, %v783
  %v824 = vmul.f32 %v346, %v783
  %v825 = vmul.f32 %v351, %v783
  %v826 = vmul.f32 %v356, %v783
  %v827 = vmul.f32 %v361, %v783
  %v828 = vmul.f32 %v366, %v783
  %v829 = vmul.f32 %v371, %v783
  %v830 = vmul.f32 %v376, %v783
  %v831 = vmul.f32 %v381, %v783
  %v832 = vmul.f32 %v386, %v783
  %v833 = vmul.f32 %v391, %v783
  %v834 = vmul.f32 %v396, %v783
  %v835 = vmul.f32 %v401, %v783
  %v836 = vmul.f32 %v406, %v783
  %v837 = vmul.f32 %v411, %v783
  %v838 = vmul.f32 %v416, %v783
  %v839 = vmul.f32 %v421, %v783
  %v840 = vmul.f32 %v426, %v783
  %v841 = vmul.f32 %v431, %v783
  %v842 = vmul.f32 %v436, %v783
  %v843 = vmul.f32 %v441, %v783
  %v844 = vmul.f32 %v446, %v783
  %v845 = vmul.f32 %v451, %v783
  %v846 = vmul.f32 %v456, %v783
  %v847 = vmul.f32 %v461, %v783
  %v848 = vmul.f32 %v466, %v783
  %v849 = vmul.f32 %v471, %v783
  %v850 = vmul.f32 %v476, %v783
  %v851 = vmul.f32 %v481, %v783
  %v852 = vmul.f32 %v486, %v783
  %v853 = vmul.f32 %v491, %v783
  %v854 = vmul.f32 %v496, %v783
  %v855 = vmul.f32 %v501, %v783
  %v856 = vmul.f32 %v506, %v783
  %v857 = vmul.f32 %v511, %v783
  %v858 = vmul.f32 %v516, %v783
  %v859 = vmul.f32 %v521, %v783
  %v860 = vmul.f32 %v526, %v783
  %v861 = vmul.f32 %v531, %v783
  %v862 = vmul.f32 %v536, %v783
  %v863 = vmul.f32 %v541, %v783
  %v864 = vmul.f32 %v546, %v783
  %v865 = vmul.f32 %v551, %v783
  %v866 = vmul.f32 %v556, %v783
  %v867 = vmul.f32 %v561, %v783
  %v868 = vmul.f32 %v566, %v783
  %v869 = vmul.f32 %v571, %v783
  %v870 = vmul.f32 %v576, %v783
  %v871 = vmul.f32 %v581, %v783
  %v872 = vmul.f32 %v586, %v783
  %v873 = vmul.f32 %v591, %v783
  %v874 = vmul.f32 %v596, %v783
  %v875 = vmul.f32 %v601, %v783
  %v876 = vmul.f32 %v606, %v783
  %v877 = vmul.f32 %v611, %v783
  %v878 = vmul.f32 %v616, %v783
  %v879 = vmul.f32 %v621, %v783
  %v880 = vmul.f32 %v626, %v783
  %v881 = vmul.f32 %v631, %v783
  %v882 = vmul.f32 %v636, %v783
  %v883 = vmul.f32 %v641, %v783
  %v884 = vmul.f32 %v646, %v783
  %v885 = vmul.f32 %v651, %v783
  %v886 = vmul.f32 %v656, %v783
  %v887 = vmul.f32 %v661, %v783
  %v888 = vmul.f32 %v666, %v783
  %v889 = vmul.f32 %v671, %v783
  %v890 = vmul.f32 %v676, %v783
  %v891 = vmul.f32 %v681, %v783
  %v892 = vmul.f32 %v686, %v783
  %v893 = vmul.f32 %v691, %v783
  %v894 = vmul.f32 %v696, %v783
  %v895 = vmul.f32 %v701, %v783
  %v896 = vmul.f32 %v706, %v783
  %v897 = vmul.f32 %v711, %v783
  %v898 = vmul.f32 %v716, %v783
  %v899 = vmul.f32 %v721, %v783
  %v900 = vmul.f32 %v726, %v783
  %v901 = vmul.f32 %v731, %v783
  %v902 = vmul.f32 %v736, %v783
  %v903 = vmul.f32 %v741, %v783
  %v904 = vmul.f32 %v746, %v783
  %v905 = vmul.f32 %v751, %v783
  %v906 = vmul.f32 %v756, %v783
  %v907 = vmul.f32 %v761, %v783
  %v908 = vmul.f32 %v766, %v783
  %v909 = vmul.f32 %v771, %v783
  %v910 = vmul.f32 %v776, %v783
  %v911 = vmul.f32 %v781, %v783
  %v912 = vld [vmem:[%s2] sm:$0x1]
  %v914 = vperm.slane %v912, 0
  %v916 = vadd.f32 %v784, %v914
  %v917 = vadd.f32 %v785, %v914
  %v918 = vadd.f32 %v786, %v914
  %v919 = vadd.f32 %v787, %v914
  %v920 = vadd.f32 %v788, %v914
  %v921 = vadd.f32 %v789, %v914
  %v922 = vadd.f32 %v790, %v914
  %v923 = vadd.f32 %v791, %v914
  %v924 = vadd.f32 %v792, %v914
  %v925 = vadd.f32 %v793, %v914
  %v926 = vadd.f32 %v794, %v914
  %v927 = vadd.f32 %v795, %v914
  %v928 = vadd.f32 %v796, %v914
  %v929 = vadd.f32 %v797, %v914
  %v930 = vadd.f32 %v798, %v914
  %v931 = vadd.f32 %v799, %v914
  %v932 = vadd.f32 %v800, %v914
  %v933 = vadd.f32 %v801, %v914
  %v934 = vadd.f32 %v802, %v914
  %v935 = vadd.f32 %v803, %v914
  %v936 = vadd.f32 %v804, %v914
  %v937 = vadd.f32 %v805, %v914
  %v938 = vadd.f32 %v806, %v914
  %v939 = vadd.f32 %v807, %v914
  %v940 = vadd.f32 %v808, %v914
  %v941 = vadd.f32 %v809, %v914
  %v942 = vadd.f32 %v810, %v914
  %v943 = vadd.f32 %v811, %v914
  %v944 = vadd.f32 %v812, %v914
  %v945 = vadd.f32 %v813, %v914
  %v946 = vadd.f32 %v814, %v914
  %v947 = vadd.f32 %v815, %v914
  %v948 = vadd.f32 %v816, %v914
  %v949 = vadd.f32 %v817, %v914
  %v950 = vadd.f32 %v818, %v914
  %v951 = vadd.f32 %v819, %v914
  %v952 = vadd.f32 %v820, %v914
  %v953 = vadd.f32 %v821, %v914
  %v954 = vadd.f32 %v822, %v914
  %v955 = vadd.f32 %v823, %v914
  %v956 = vadd.f32 %v824, %v914
  %v957 = vadd.f32 %v825, %v914
  %v958 = vadd.f32 %v826, %v914
  %v959 = vadd.f32 %v827, %v914
  %v960 = vadd.f32 %v828, %v914
  %v961 = vadd.f32 %v829, %v914
  %v962 = vadd.f32 %v830, %v914
  %v963 = vadd.f32 %v831, %v914
  %v964 = vadd.f32 %v832, %v914
  %v965 = vadd.f32 %v833, %v914
  %v966 = vadd.f32 %v834, %v914
  %v967 = vadd.f32 %v835, %v914
  %v968 = vadd.f32 %v836, %v914
  %v969 = vadd.f32 %v837, %v914
  %v970 = vadd.f32 %v838, %v914
  %v971 = vadd.f32 %v839, %v914
  %v972 = vadd.f32 %v840, %v914
  %v973 = vadd.f32 %v841, %v914
  %v974 = vadd.f32 %v842, %v914
  %v975 = vadd.f32 %v843, %v914
  %v976 = vadd.f32 %v844, %v914
  %v977 = vadd.f32 %v845, %v914
  %v978 = vadd.f32 %v846, %v914
  %v979 = vadd.f32 %v847, %v914
  %v980 = vadd.f32 %v848, %v914
  %v981 = vadd.f32 %v849, %v914
  %v982 = vadd.f32 %v850, %v914
  %v983 = vadd.f32 %v851, %v914
  %v984 = vadd.f32 %v852, %v914
  %v985 = vadd.f32 %v853, %v914
  %v986 = vadd.f32 %v854, %v914
  %v987 = vadd.f32 %v855, %v914
  %v988 = vadd.f32 %v856, %v914
  %v989 = vadd.f32 %v857, %v914
  %v990 = vadd.f32 %v858, %v914
  %v991 = vadd.f32 %v859, %v914
  %v992 = vadd.f32 %v860, %v914
  %v993 = vadd.f32 %v861, %v914
  %v994 = vadd.f32 %v862, %v914
  %v995 = vadd.f32 %v863, %v914
  %v996 = vadd.f32 %v864, %v914
  %v997 = vadd.f32 %v865, %v914
  %v998 = vadd.f32 %v866, %v914
  %v999 = vadd.f32 %v867, %v914
  %v1000 = vadd.f32 %v868, %v914
  %v1001 = vadd.f32 %v869, %v914
  %v1002 = vadd.f32 %v870, %v914
  %v1003 = vadd.f32 %v871, %v914
  %v1004 = vadd.f32 %v872, %v914
  %v1005 = vadd.f32 %v873, %v914
  %v1006 = vadd.f32 %v874, %v914
  %v1007 = vadd.f32 %v875, %v914
  %v1008 = vadd.f32 %v876, %v914
  %v1009 = vadd.f32 %v877, %v914
  %v1010 = vadd.f32 %v878, %v914
  %v1011 = vadd.f32 %v879, %v914
  %v1012 = vadd.f32 %v880, %v914
  %v1013 = vadd.f32 %v881, %v914
  %v1014 = vadd.f32 %v882, %v914
  %v1015 = vadd.f32 %v883, %v914
  %v1016 = vadd.f32 %v884, %v914
  %v1017 = vadd.f32 %v885, %v914
  %v1018 = vadd.f32 %v886, %v914
  %v1019 = vadd.f32 %v887, %v914
  %v1020 = vadd.f32 %v888, %v914
  %v1021 = vadd.f32 %v889, %v914
  %v1022 = vadd.f32 %v890, %v914
  %v1023 = vadd.f32 %v891, %v914
  %v1024 = vadd.f32 %v892, %v914
  %v1025 = vadd.f32 %v893, %v914
  %v1026 = vadd.f32 %v894, %v914
  %v1027 = vadd.f32 %v895, %v914
  %v1028 = vadd.f32 %v896, %v914
  %v1029 = vadd.f32 %v897, %v914
  %v1030 = vadd.f32 %v898, %v914
  %v1031 = vadd.f32 %v899, %v914
  %v1032 = vadd.f32 %v900, %v914
  %v1033 = vadd.f32 %v901, %v914
  %v1034 = vadd.f32 %v902, %v914
  %v1035 = vadd.f32 %v903, %v914
  %v1036 = vadd.f32 %v904, %v914
  %v1037 = vadd.f32 %v905, %v914
  %v1038 = vadd.f32 %v906, %v914
  %v1039 = vadd.f32 %v907, %v914
  %v1040 = vadd.f32 %v908, %v914
  %v1041 = vadd.f32 %v909, %v914
  %v1042 = vadd.f32 %v910, %v914
  %v1043 = vadd.f32 %v911, %v914
  %1044 = vset.pattern.permute.xlu0 1
  %1045 = vperm.xlu0 %1044, %v14
  %v1046 = vpop.permute.xlu0 %1045
  %1048 = vset.pattern.permute.xlu0 1
  %1049 = vperm.xlu0 %1048, %v15
  %v1050 = vpop.permute.xlu0 %1049
  %1052 = vset.pattern.permute.xlu0 1
  %1053 = vperm.xlu0 %1052, %v16
  %v1054 = vpop.permute.xlu0 %1053
  %1056 = vset.pattern.permute.xlu0 1
  %1057 = vperm.xlu0 %1056, %v17
  %v1058 = vpop.permute.xlu0 %1057
  %1060 = vset.pattern.permute.xlu0 1
  %1061 = vperm.xlu0 %1060, %v18
  %v1062 = vpop.permute.xlu0 %1061
  %1064 = vset.pattern.permute.xlu0 1
  %1065 = vperm.xlu0 %1064, %v19
  %v1066 = vpop.permute.xlu0 %1065
  %1068 = vset.pattern.permute.xlu0 1
  %1069 = vperm.xlu0 %1068, %v20
  %v1070 = vpop.permute.xlu0 %1069
  %1072 = vset.pattern.permute.xlu0 1
  %1073 = vperm.xlu0 %1072, %v21
  %v1074 = vpop.permute.xlu0 %1073
  %1076 = vset.pattern.permute.xlu0 1
  %1077 = vperm.xlu0 %1076, %v22
  %v1078 = vpop.permute.xlu0 %1077
  %1080 = vset.pattern.permute.xlu0 1
  %1081 = vperm.xlu0 %1080, %v23
  %v1082 = vpop.permute.xlu0 %1081
  %1084 = vset.pattern.permute.xlu0 1
  %1085 = vperm.xlu0 %1084, %v24
  %v1086 = vpop.permute.xlu0 %1085
  %1088 = vset.pattern.permute.xlu0 1
  %1089 = vperm.xlu0 %1088, %v25
  %v1090 = vpop.permute.xlu0 %1089
  %1092 = vset.pattern.permute.xlu0 1
  %1093 = vperm.xlu0 %1092, %v26
  %v1094 = vpop.permute.xlu0 %1093
  %1096 = vset.pattern.permute.xlu0 1
  %1097 = vperm.xlu0 %1096, %v27
  %v1098 = vpop.permute.xlu0 %1097
  %1100 = vset.pattern.permute.xlu0 1
  %1101 = vperm.xlu0 %1100, %v28
  %v1102 = vpop.permute.xlu0 %1101
  %1104 = vset.pattern.permute.xlu0 1
  %1105 = vperm.xlu0 %1104, %v29
  %v1106 = vpop.permute.xlu0 %1105
  %1108 = vset.pattern.permute.xlu0 1
  %1109 = vperm.xlu0 %1108, %v30
  %v1110 = vpop.permute.xlu0 %1109
  %1112 = vset.pattern.permute.xlu0 1
  %1113 = vperm.xlu0 %1112, %v31
  %v1114 = vpop.permute.xlu0 %1113
  %1116 = vset.pattern.permute.xlu0 1
  %1117 = vperm.xlu0 %1116, %v32
  %v1118 = vpop.permute.xlu0 %1117
  %1120 = vset.pattern.permute.xlu0 1
  %1121 = vperm.xlu0 %1120, %v33
  %v1122 = vpop.permute.xlu0 %1121
  %1124 = vset.pattern.permute.xlu0 1
  %1125 = vperm.xlu0 %1124, %v34
  %v1126 = vpop.permute.xlu0 %1125
  %1128 = vset.pattern.permute.xlu0 1
  %1129 = vperm.xlu0 %1128, %v35
  %v1130 = vpop.permute.xlu0 %1129
  %1132 = vset.pattern.permute.xlu0 1
  %1133 = vperm.xlu0 %1132, %v36
  %v1134 = vpop.permute.xlu0 %1133
  %1136 = vset.pattern.permute.xlu0 1
  %1137 = vperm.xlu0 %1136, %v37
  %v1138 = vpop.permute.xlu0 %1137
  %1140 = vset.pattern.permute.xlu0 1
  %1141 = vperm.xlu0 %1140, %v38
  %v1142 = vpop.permute.xlu0 %1141
  %1144 = vset.pattern.permute.xlu0 1
  %1145 = vperm.xlu0 %1144, %v39
  %v1146 = vpop.permute.xlu0 %1145
  %1148 = vset.pattern.permute.xlu0 1
  %1149 = vperm.xlu0 %1148, %v40
  %v1150 = vpop.permute.xlu0 %1149
  %1152 = vset.pattern.permute.xlu0 1
  %1153 = vperm.xlu0 %1152, %v41
  %v1154 = vpop.permute.xlu0 %1153
  %1156 = vset.pattern.permute.xlu0 1
  %1157 = vperm.xlu0 %1156, %v42
  %v1158 = vpop.permute.xlu0 %1157
  %1160 = vset.pattern.permute.xlu0 1
  %1161 = vperm.xlu0 %1160, %v43
  %v1162 = vpop.permute.xlu0 %1161
  %1164 = vset.pattern.permute.xlu0 1
  %1165 = vperm.xlu0 %1164, %v44
  %v1166 = vpop.permute.xlu0 %1165
  %1168 = vset.pattern.permute.xlu0 1
  %1169 = vperm.xlu0 %1168, %v45
  %v1170 = vpop.permute.xlu0 %1169
  %1172 = vset.pattern.permute.xlu0 1
  %1173 = vperm.xlu0 %1172, %v46
  %v1174 = vpop.permute.xlu0 %1173
  %1176 = vset.pattern.permute.xlu0 1
  %1177 = vperm.xlu0 %1176, %v47
  %v1178 = vpop.permute.xlu0 %1177
  %1180 = vset.pattern.permute.xlu0 1
  %1181 = vperm.xlu0 %1180, %v48
  %v1182 = vpop.permute.xlu0 %1181
  %1184 = vset.pattern.permute.xlu0 1
  %1185 = vperm.xlu0 %1184, %v49
  %v1186 = vpop.permute.xlu0 %1185
  %1188 = vset.pattern.permute.xlu0 1
  %1189 = vperm.xlu0 %1188, %v50
  %v1190 = vpop.permute.xlu0 %1189
  %1192 = vset.pattern.permute.xlu0 1
  %1193 = vperm.xlu0 %1192, %v51
  %v1194 = vpop.permute.xlu0 %1193
  %1196 = vset.pattern.permute.xlu0 1
  %1197 = vperm.xlu0 %1196, %v52
  %v1198 = vpop.permute.xlu0 %1197
  %1200 = vset.pattern.permute.xlu0 1
  %1201 = vperm.xlu0 %1200, %v53
  %v1202 = vpop.permute.xlu0 %1201
  %1204 = vset.pattern.permute.xlu0 1
  %1205 = vperm.xlu0 %1204, %v54
  %v1206 = vpop.permute.xlu0 %1205
  %1208 = vset.pattern.permute.xlu0 1
  %1209 = vperm.xlu0 %1208, %v55
  %v1210 = vpop.permute.xlu0 %1209
  %1212 = vset.pattern.permute.xlu0 1
  %1213 = vperm.xlu0 %1212, %v56
  %v1214 = vpop.permute.xlu0 %1213
  %1216 = vset.pattern.permute.xlu0 1
  %1217 = vperm.xlu0 %1216, %v57
  %v1218 = vpop.permute.xlu0 %1217
  %1220 = vset.pattern.permute.xlu0 1
  %1221 = vperm.xlu0 %1220, %v58
  %v1222 = vpop.permute.xlu0 %1221
  %1224 = vset.pattern.permute.xlu0 1
  %1225 = vperm.xlu0 %1224, %v59
  %v1226 = vpop.permute.xlu0 %1225
  %1228 = vset.pattern.permute.xlu0 1
  %1229 = vperm.xlu0 %1228, %v60
  %v1230 = vpop.permute.xlu0 %1229
  %1232 = vset.pattern.permute.xlu0 1
  %1233 = vperm.xlu0 %1232, %v61
  %v1234 = vpop.permute.xlu0 %1233
  %1236 = vset.pattern.permute.xlu0 1
  %1237 = vperm.xlu0 %1236, %v62
  %v1238 = vpop.permute.xlu0 %1237
  %1240 = vset.pattern.permute.xlu0 1
  %1241 = vperm.xlu0 %1240, %v63
  %v1242 = vpop.permute.xlu0 %1241
  %1244 = vset.pattern.permute.xlu0 1
  %1245 = vperm.xlu0 %1244, %v64
  %v1246 = vpop.permute.xlu0 %1245
  %1248 = vset.pattern.permute.xlu0 1
  %1249 = vperm.xlu0 %1248, %v65
  %v1250 = vpop.permute.xlu0 %1249
  %1252 = vset.pattern.permute.xlu0 1
  %1253 = vperm.xlu0 %1252, %v66
  %v1254 = vpop.permute.xlu0 %1253
  %1256 = vset.pattern.permute.xlu0 1
  %1257 = vperm.xlu0 %1256, %v67
  %v1258 = vpop.permute.xlu0 %1257
  %1260 = vset.pattern.permute.xlu0 1
  %1261 = vperm.xlu0 %1260, %v68
  %v1262 = vpop.permute.xlu0 %1261
  %1264 = vset.pattern.permute.xlu0 1
  %1265 = vperm.xlu0 %1264, %v69
  %v1266 = vpop.permute.xlu0 %1265
  %1268 = vset.pattern.permute.xlu0 1
  %1269 = vperm.xlu0 %1268, %v70
  %v1270 = vpop.permute.xlu0 %1269
  %1272 = vset.pattern.permute.xlu0 1
  %1273 = vperm.xlu0 %1272, %v71
  %v1274 = vpop.permute.xlu0 %1273
  %1276 = vset.pattern.permute.xlu0 1
  %1277 = vperm.xlu0 %1276, %v72
  %v1278 = vpop.permute.xlu0 %1277
  %1280 = vset.pattern.permute.xlu0 1
  %1281 = vperm.xlu0 %1280, %v73
  %v1282 = vpop.permute.xlu0 %1281
  %1284 = vset.pattern.permute.xlu0 1
  %1285 = vperm.xlu0 %1284, %v74
  %v1286 = vpop.permute.xlu0 %1285
  %1288 = vset.pattern.permute.xlu0 1
  %1289 = vperm.xlu0 %1288, %v75
  %v1290 = vpop.permute.xlu0 %1289
  %1292 = vset.pattern.permute.xlu0 1
  %1293 = vperm.xlu0 %1292, %v76
  %v1294 = vpop.permute.xlu0 %1293
  %1296 = vset.pattern.permute.xlu0 1
  %1297 = vperm.xlu0 %1296, %v77
  %v1298 = vpop.permute.xlu0 %1297
  %1300 = vset.pattern.permute.xlu0 1
  %1301 = vperm.xlu0 %1300, %v78
  %v1302 = vpop.permute.xlu0 %1301
  %1304 = vset.pattern.permute.xlu0 1
  %1305 = vperm.xlu0 %1304, %v79
  %v1306 = vpop.permute.xlu0 %1305
  %1308 = vset.pattern.permute.xlu0 1
  %1309 = vperm.xlu0 %1308, %v80
  %v1310 = vpop.permute.xlu0 %1309
  %1312 = vset.pattern.permute.xlu0 1
  %1313 = vperm.xlu0 %1312, %v81
  %v1314 = vpop.permute.xlu0 %1313
  %1316 = vset.pattern.permute.xlu0 1
  %1317 = vperm.xlu0 %1316, %v82
  %v1318 = vpop.permute.xlu0 %1317
  %1320 = vset.pattern.permute.xlu0 1
  %1321 = vperm.xlu0 %1320, %v83
  %v1322 = vpop.permute.xlu0 %1321
  %1324 = vset.pattern.permute.xlu0 1
  %1325 = vperm.xlu0 %1324, %v84
  %v1326 = vpop.permute.xlu0 %1325
  %1328 = vset.pattern.permute.xlu0 1
  %1329 = vperm.xlu0 %1328, %v85
  %v1330 = vpop.permute.xlu0 %1329
  %1332 = vset.pattern.permute.xlu0 1
  %1333 = vperm.xlu0 %1332, %v86
  %v1334 = vpop.permute.xlu0 %1333
  %1336 = vset.pattern.permute.xlu0 1
  %1337 = vperm.xlu0 %1336, %v87
  %v1338 = vpop.permute.xlu0 %1337
  %1340 = vset.pattern.permute.xlu0 1
  %1341 = vperm.xlu0 %1340, %v88
  %v1342 = vpop.permute.xlu0 %1341
  %1344 = vset.pattern.permute.xlu0 1
  %1345 = vperm.xlu0 %1344, %v89
  %v1346 = vpop.permute.xlu0 %1345
  %1348 = vset.pattern.permute.xlu0 1
  %1349 = vperm.xlu0 %1348, %v90
  %v1350 = vpop.permute.xlu0 %1349
  %1352 = vset.pattern.permute.xlu0 1
  %1353 = vperm.xlu0 %1352, %v91
  %v1354 = vpop.permute.xlu0 %1353
  %1356 = vset.pattern.permute.xlu0 1
  %1357 = vperm.xlu0 %1356, %v92
  %v1358 = vpop.permute.xlu0 %1357
  %1360 = vset.pattern.permute.xlu0 1
  %1361 = vperm.xlu0 %1360, %v93
  %v1362 = vpop.permute.xlu0 %1361
  %1364 = vset.pattern.permute.xlu0 1
  %1365 = vperm.xlu0 %1364, %v94
  %v1366 = vpop.permute.xlu0 %1365
  %1368 = vset.pattern.permute.xlu0 1
  %1369 = vperm.xlu0 %1368, %v95
  %v1370 = vpop.permute.xlu0 %1369
  %1372 = vset.pattern.permute.xlu0 1
  %1373 = vperm.xlu0 %1372, %v96
  %v1374 = vpop.permute.xlu0 %1373
  %1376 = vset.pattern.permute.xlu0 1
  %1377 = vperm.xlu0 %1376, %v97
  %v1378 = vpop.permute.xlu0 %1377
  %1380 = vset.pattern.permute.xlu0 1
  %1381 = vperm.xlu0 %1380, %v98
  %v1382 = vpop.permute.xlu0 %1381
  %1384 = vset.pattern.permute.xlu0 1
  %1385 = vperm.xlu0 %1384, %v99
  %v1386 = vpop.permute.xlu0 %1385
  %1388 = vset.pattern.permute.xlu0 1
  %1389 = vperm.xlu0 %1388, %v100
  %v1390 = vpop.permute.xlu0 %1389
  %1392 = vset.pattern.permute.xlu0 1
  %1393 = vperm.xlu0 %1392, %v101
  %v1394 = vpop.permute.xlu0 %1393
  %1396 = vset.pattern.permute.xlu0 1
  %1397 = vperm.xlu0 %1396, %v102
  %v1398 = vpop.permute.xlu0 %1397
  %1400 = vset.pattern.permute.xlu0 1
  %1401 = vperm.xlu0 %1400, %v103
  %v1402 = vpop.permute.xlu0 %1401
  %1404 = vset.pattern.permute.xlu0 1
  %1405 = vperm.xlu0 %1404, %v104
  %v1406 = vpop.permute.xlu0 %1405
  %1408 = vset.pattern.permute.xlu0 1
  %1409 = vperm.xlu0 %1408, %v105
  %v1410 = vpop.permute.xlu0 %1409
  %1412 = vset.pattern.permute.xlu0 1
  %1413 = vperm.xlu0 %1412, %v106
  %v1414 = vpop.permute.xlu0 %1413
  %1416 = vset.pattern.permute.xlu0 1
  %1417 = vperm.xlu0 %1416, %v107
  %v1418 = vpop.permute.xlu0 %1417
  %1420 = vset.pattern.permute.xlu0 1
  %1421 = vperm.xlu0 %1420, %v108
  %v1422 = vpop.permute.xlu0 %1421
  %1424 = vset.pattern.permute.xlu0 1
  %1425 = vperm.xlu0 %1424, %v109
  %v1426 = vpop.permute.xlu0 %1425
  %1428 = vset.pattern.permute.xlu0 1
  %1429 = vperm.xlu0 %1428, %v110
  %v1430 = vpop.permute.xlu0 %1429
  %1432 = vset.pattern.permute.xlu0 1
  %1433 = vperm.xlu0 %1432, %v111
  %v1434 = vpop.permute.xlu0 %1433
  %1436 = vset.pattern.permute.xlu0 1
  %1437 = vperm.xlu0 %1436, %v112
  %v1438 = vpop.permute.xlu0 %1437
  %1440 = vset.pattern.permute.xlu0 1
  %1441 = vperm.xlu0 %1440, %v113
  %v1442 = vpop.permute.xlu0 %1441
  %1444 = vset.pattern.permute.xlu0 1
  %1445 = vperm.xlu0 %1444, %v114
  %v1446 = vpop.permute.xlu0 %1445
  %1448 = vset.pattern.permute.xlu0 1
  %1449 = vperm.xlu0 %1448, %v115
  %v1450 = vpop.permute.xlu0 %1449
  %1452 = vset.pattern.permute.xlu0 1
  %1453 = vperm.xlu0 %1452, %v116
  %v1454 = vpop.permute.xlu0 %1453
  %1456 = vset.pattern.permute.xlu0 1
  %1457 = vperm.xlu0 %1456, %v117
  %v1458 = vpop.permute.xlu0 %1457
  %1460 = vset.pattern.permute.xlu0 1
  %1461 = vperm.xlu0 %1460, %v118
  %v1462 = vpop.permute.xlu0 %1461
  %1464 = vset.pattern.permute.xlu0 1
  %1465 = vperm.xlu0 %1464, %v119
  %v1466 = vpop.permute.xlu0 %1465
  %1468 = vset.pattern.permute.xlu0 1
  %1469 = vperm.xlu0 %1468, %v120
  %v1470 = vpop.permute.xlu0 %1469
  %1472 = vset.pattern.permute.xlu0 1
  %1473 = vperm.xlu0 %1472, %v121
  %v1474 = vpop.permute.xlu0 %1473
  %1476 = vset.pattern.permute.xlu0 1
  %1477 = vperm.xlu0 %1476, %v122
  %v1478 = vpop.permute.xlu0 %1477
  %1480 = vset.pattern.permute.xlu0 1
  %1481 = vperm.xlu0 %1480, %v123
  %v1482 = vpop.permute.xlu0 %1481
  %1484 = vset.pattern.permute.xlu0 1
  %1485 = vperm.xlu0 %1484, %v124
  %v1486 = vpop.permute.xlu0 %1485
  %1488 = vset.pattern.permute.xlu0 1
  %1489 = vperm.xlu0 %1488, %v125
  %v1490 = vpop.permute.xlu0 %1489
  %1492 = vset.pattern.permute.xlu0 1
  %1493 = vperm.xlu0 %1492, %v126
  %v1494 = vpop.permute.xlu0 %1493
  %1496 = vset.pattern.permute.xlu0 1
  %1497 = vperm.xlu0 %1496, %v127
  %v1498 = vpop.permute.xlu0 %1497
  %1500 = vset.pattern.permute.xlu0 1
  %1501 = vperm.xlu0 %1500, %v128
  %v1502 = vpop.permute.xlu0 %1501
  %1504 = vset.pattern.permute.xlu0 1
  %1505 = vperm.xlu0 %1504, %v129
  %v1506 = vpop.permute.xlu0 %1505
  %1508 = vset.pattern.permute.xlu0 1
  %1509 = vperm.xlu0 %1508, %v130
  %v1510 = vpop.permute.xlu0 %1509
  %1512 = vset.pattern.permute.xlu0 1
  %1513 = vperm.xlu0 %1512, %v131
  %v1514 = vpop.permute.xlu0 %1513
  %1516 = vset.pattern.permute.xlu0 1
  %1517 = vperm.xlu0 %1516, %v132
  %v1518 = vpop.permute.xlu0 %1517
  %1520 = vset.pattern.permute.xlu0 1
  %1521 = vperm.xlu0 %1520, %v133
  %v1522 = vpop.permute.xlu0 %1521
  %1524 = vset.pattern.permute.xlu0 1
  %1525 = vperm.xlu0 %1524, %v134
  %v1526 = vpop.permute.xlu0 %1525
  %1528 = vset.pattern.permute.xlu0 1
  %1529 = vperm.xlu0 %1528, %v135
  %v1530 = vpop.permute.xlu0 %1529
  %1532 = vset.pattern.permute.xlu0 1
  %1533 = vperm.xlu0 %1532, %v136
  %v1534 = vpop.permute.xlu0 %1533
  %1536 = vset.pattern.permute.xlu0 1
  %1537 = vperm.xlu0 %1536, %v137
  %v1538 = vpop.permute.xlu0 %1537
  %1540 = vset.pattern.permute.xlu0 1
  %1541 = vperm.xlu0 %1540, %v138
  %v1542 = vpop.permute.xlu0 %1541
  %1544 = vset.pattern.permute.xlu0 1
  %1545 = vperm.xlu0 %1544, %v139
  %v1546 = vpop.permute.xlu0 %1545
  %1548 = vset.pattern.permute.xlu0 1
  %1549 = vperm.xlu0 %1548, %v140
  %v1550 = vpop.permute.xlu0 %1549
  %1552 = vset.pattern.permute.xlu0 1
  %1553 = vperm.xlu0 %1552, %v141
  %v1554 = vpop.permute.xlu0 %1553
  %v1556 = vperm.slane %v142, 1
  %v1557 = vmul.f32 %v1046, %v1556
  %v1558 = vmul.f32 %v1050, %v1556
  %v1559 = vmul.f32 %v1054, %v1556
  %v1560 = vmul.f32 %v1058, %v1556
  %v1561 = vmul.f32 %v1062, %v1556
  %v1562 = vmul.f32 %v1066, %v1556
  %v1563 = vmul.f32 %v1070, %v1556
  %v1564 = vmul.f32 %v1074, %v1556
  %v1565 = vmul.f32 %v1078, %v1556
  %v1566 = vmul.f32 %v1082, %v1556
  %v1567 = vmul.f32 %v1086, %v1556
  %v1568 = vmul.f32 %v1090, %v1556
  %v1569 = vmul.f32 %v1094, %v1556
  %v1570 = vmul.f32 %v1098, %v1556
  %v1571 = vmul.f32 %v1102, %v1556
  %v1572 = vmul.f32 %v1106, %v1556
  %v1573 = vmul.f32 %v1110, %v1556
  %v1574 = vmul.f32 %v1114, %v1556
  %v1575 = vmul.f32 %v1118, %v1556
  %v1576 = vmul.f32 %v1122, %v1556
  %v1577 = vmul.f32 %v1126, %v1556
  %v1578 = vmul.f32 %v1130, %v1556
  %v1579 = vmul.f32 %v1134, %v1556
  %v1580 = vmul.f32 %v1138, %v1556
  %v1581 = vmul.f32 %v1142, %v1556
  %v1582 = vmul.f32 %v1146, %v1556
  %v1583 = vmul.f32 %v1150, %v1556
  %v1584 = vmul.f32 %v1154, %v1556
  %v1585 = vmul.f32 %v1158, %v1556
  %v1586 = vmul.f32 %v1162, %v1556
  %v1587 = vmul.f32 %v1166, %v1556
  %v1588 = vmul.f32 %v1170, %v1556
  %v1589 = vmul.f32 %v1174, %v1556
  %v1590 = vmul.f32 %v1178, %v1556
  %v1591 = vmul.f32 %v1182, %v1556
  %v1592 = vmul.f32 %v1186, %v1556
  %v1593 = vmul.f32 %v1190, %v1556
  %v1594 = vmul.f32 %v1194, %v1556
  %v1595 = vmul.f32 %v1198, %v1556
  %v1596 = vmul.f32 %v1202, %v1556
  %v1597 = vmul.f32 %v1206, %v1556
  %v1598 = vmul.f32 %v1210, %v1556
  %v1599 = vmul.f32 %v1214, %v1556
  %v1600 = vmul.f32 %v1218, %v1556
  %v1601 = vmul.f32 %v1222, %v1556
  %v1602 = vmul.f32 %v1226, %v1556
  %v1603 = vmul.f32 %v1230, %v1556
  %v1604 = vmul.f32 %v1234, %v1556
  %v1605 = vmul.f32 %v1238, %v1556
  %v1606 = vmul.f32 %v1242, %v1556
  %v1607 = vmul.f32 %v1246, %v1556
  %v1608 = vmul.f32 %v1250, %v1556
  %v1609 = vmul.f32 %v1254, %v1556
  %v1610 = vmul.f32 %v1258, %v1556
  %v1611 = vmul.f32 %v1262, %v1556
  %v1612 = vmul.f32 %v1266, %v1556
  %v1613 = vmul.f32 %v1270, %v1556
  %v1614 = vmul.f32 %v1274, %v1556
  %v1615 = vmul.f32 %v1278, %v1556
  %v1616 = vmul.f32 %v1282, %v1556
  %v1617 = vmul.f32 %v1286, %v1556
  %v1618 = vmul.f32 %v1290, %v1556
  %v1619 = vmul.f32 %v1294, %v1556
  %v1620 = vmul.f32 %v1298, %v1556
  %v1621 = vmul.f32 %v1302, %v1556
  %v1622 = vmul.f32 %v1306, %v1556
  %v1623 = vmul.f32 %v1310, %v1556
  %v1624 = vmul.f32 %v1314, %v1556
  %v1625 = vmul.f32 %v1318, %v1556
  %v1626 = vmul.f32 %v1322, %v1556
  %v1627 = vmul.f32 %v1326, %v1556
  %v1628 = vmul.f32 %v1330, %v1556
  %v1629 = vmul.f32 %v1334, %v1556
  %v1630 = vmul.f32 %v1338, %v1556
  %v1631 = vmul.f32 %v1342, %v1556
  %v1632 = vmul.f32 %v1346, %v1556
  %v1633 = vmul.f32 %v1350, %v1556
  %v1634 = vmul.f32 %v1354, %v1556
  %v1635 = vmul.f32 %v1358, %v1556
  %v1636 = vmul.f32 %v1362, %v1556
  %v1637 = vmul.f32 %v1366, %v1556
  %v1638 = vmul.f32 %v1370, %v1556
  %v1639 = vmul.f32 %v1374, %v1556
  %v1640 = vmul.f32 %v1378, %v1556
  %v1641 = vmul.f32 %v1382, %v1556
  %v1642 = vmul.f32 %v1386, %v1556
  %v1643 = vmul.f32 %v1390, %v1556
  %v1644 = vmul.f32 %v1394, %v1556
  %v1645 = vmul.f32 %v1398, %v1556
  %v1646 = vmul.f32 %v1402, %v1556
  %v1647 = vmul.f32 %v1406, %v1556
  %v1648 = vmul.f32 %v1410, %v1556
  %v1649 = vmul.f32 %v1414, %v1556
  %v1650 = vmul.f32 %v1418, %v1556
  %v1651 = vmul.f32 %v1422, %v1556
  %v1652 = vmul.f32 %v1426, %v1556
  %v1653 = vmul.f32 %v1430, %v1556
  %v1654 = vmul.f32 %v1434, %v1556
  %v1655 = vmul.f32 %v1438, %v1556
  %v1656 = vmul.f32 %v1442, %v1556
  %v1657 = vmul.f32 %v1446, %v1556
  %v1658 = vmul.f32 %v1450, %v1556
  %v1659 = vmul.f32 %v1454, %v1556
  %v1660 = vmul.f32 %v1458, %v1556
  %v1661 = vmul.f32 %v1462, %v1556
  %v1662 = vmul.f32 %v1466, %v1556
  %v1663 = vmul.f32 %v1470, %v1556
  %v1664 = vmul.f32 %v1474, %v1556
  %v1665 = vmul.f32 %v1478, %v1556
  %v1666 = vmul.f32 %v1482, %v1556
  %v1667 = vmul.f32 %v1486, %v1556
  %v1668 = vmul.f32 %v1490, %v1556
  %v1669 = vmul.f32 %v1494, %v1556
  %v1670 = vmul.f32 %v1498, %v1556
  %v1671 = vmul.f32 %v1502, %v1556
  %v1672 = vmul.f32 %v1506, %v1556
  %v1673 = vmul.f32 %v1510, %v1556
  %v1674 = vmul.f32 %v1514, %v1556
  %v1675 = vmul.f32 %v1518, %v1556
  %v1676 = vmul.f32 %v1522, %v1556
  %v1677 = vmul.f32 %v1526, %v1556
  %v1678 = vmul.f32 %v1530, %v1556
  %v1679 = vmul.f32 %v1534, %v1556
  %v1680 = vmul.f32 %v1538, %v1556
  %v1681 = vmul.f32 %v1542, %v1556
  %v1682 = vmul.f32 %v1546, %v1556
  %v1683 = vmul.f32 %v1550, %v1556
  %v1684 = vmul.f32 %v1554, %v1556
  %v1685 = vadd.f32 %v916, %v1557
  %v1686 = vadd.f32 %v917, %v1558
  %v1687 = vadd.f32 %v918, %v1559
  %v1688 = vadd.f32 %v919, %v1560
  %v1689 = vadd.f32 %v920, %v1561
  %v1690 = vadd.f32 %v921, %v1562
  %v1691 = vadd.f32 %v922, %v1563
  %v1692 = vadd.f32 %v923, %v1564
  %v1693 = vadd.f32 %v924, %v1565
  %v1694 = vadd.f32 %v925, %v1566
  %v1695 = vadd.f32 %v926, %v1567
  %v1696 = vadd.f32 %v927, %v1568
  %v1697 = vadd.f32 %v928, %v1569
  %v1698 = vadd.f32 %v929, %v1570
  %v1699 = vadd.f32 %v930, %v1571
  %v1700 = vadd.f32 %v931, %v1572
  %v1701 = vadd.f32 %v932, %v1573
  %v1702 = vadd.f32 %v933, %v1574
  %v1703 = vadd.f32 %v934, %v1575
  %v1704 = vadd.f32 %v935, %v1576
  %v1705 = vadd.f32 %v936, %v1577
  %v1706 = vadd.f32 %v937, %v1578
  %v1707 = vadd.f32 %v938, %v1579
  %v1708 = vadd.f32 %v939, %v1580
  %v1709 = vadd.f32 %v940, %v1581
  %v1710 = vadd.f32 %v941, %v1582
  %v1711 = vadd.f32 %v942, %v1583
  %v1712 = vadd.f32 %v943, %v1584
  %v1713 = vadd.f32 %v944, %v1585
  %v1714 = vadd.f32 %v945, %v1586
  %v1715 = vadd.f32 %v946, %v1587
  %v1716 = vadd.f32 %v947, %v1588
  %v1717 = vadd.f32 %v948, %v1589
  %v1718 = vadd.f32 %v949, %v1590
  %v1719 = vadd.f32 %v950, %v1591
  %v1720 = vadd.f32 %v951, %v1592
  %v1721 = vadd.f32 %v952, %v1593
  %v1722 = vadd.f32 %v953, %v1594
  %v1723 = vadd.f32 %v954, %v1595
  %v1724 = vadd.f32 %v955, %v1596
  %v1725 = vadd.f32 %v956, %v1597
  %v1726 = vadd.f32 %v957, %v1598
  %v1727 = vadd.f32 %v958, %v1599
  %v1728 = vadd.f32 %v959, %v1600
  %v1729 = vadd.f32 %v960, %v1601
  %v1730 = vadd.f32 %v961, %v1602
  %v1731 = vadd.f32 %v962, %v1603
  %v1732 = vadd.f32 %v963, %v1604
  %v1733 = vadd.f32 %v964, %v1605
  %v1734 = vadd.f32 %v965, %v1606
  %v1735 = vadd.f32 %v966, %v1607
  %v1736 = vadd.f32 %v967, %v1608
  %v1737 = vadd.f32 %v968, %v1609
  %v1738 = vadd.f32 %v969, %v1610
  %v1739 = vadd.f32 %v970, %v1611
  %v1740 = vadd.f32 %v971, %v1612
  %v1741 = vadd.f32 %v972, %v1613
  %v1742 = vadd.f32 %v973, %v1614
  %v1743 = vadd.f32 %v974, %v1615
  %v1744 = vadd.f32 %v975, %v1616
  %v1745 = vadd.f32 %v976, %v1617
  %v1746 = vadd.f32 %v977, %v1618
  %v1747 = vadd.f32 %v978, %v1619
  %v1748 = vadd.f32 %v979, %v1620
  %v1749 = vadd.f32 %v980, %v1621
  %v1750 = vadd.f32 %v981, %v1622
  %v1751 = vadd.f32 %v982, %v1623
  %v1752 = vadd.f32 %v983, %v1624
  %v1753 = vadd.f32 %v984, %v1625
  %v1754 = vadd.f32 %v985, %v1626
  %v1755 = vadd.f32 %v986, %v1627
  %v1756 = vadd.f32 %v987, %v1628
  %v1757 = vadd.f32 %v988, %v1629
  %v1758 = vadd.f32 %v989, %v1630
  %v1759 = vadd.f32 %v990, %v1631
  %v1760 = vadd.f32 %v991, %v1632
  %v1761 = vadd.f32 %v992, %v1633
  %v1762 = vadd.f32 %v993, %v1634
  %v1763 = vadd.f32 %v994, %v1635
  %v1764 = vadd.f32 %v995, %v1636
  %v1765 = vadd.f32 %v996, %v1637
  %v1766 = vadd.f32 %v997, %v1638
  %v1767 = vadd.f32 %v998, %v1639
  %v1768 = vadd.f32 %v999, %v1640
  %v1769 = vadd.f32 %v1000, %v1641
  %v1770 = vadd.f32 %v1001, %v1642
  %v1771 = vadd.f32 %v1002, %v1643
  %v1772 = vadd.f32 %v1003, %v1644
  %v1773 = vadd.f32 %v1004, %v1645
  %v1774 = vadd.f32 %v1005, %v1646
  %v1775 = vadd.f32 %v1006, %v1647
  %v1776 = vadd.f32 %v1007, %v1648
  %v1777 = vadd.f32 %v1008, %v1649
  %v1778 = vadd.f32 %v1009, %v1650
  %v1779 = vadd.f32 %v1010, %v1651
  %v1780 = vadd.f32 %v1011, %v1652
  %v1781 = vadd.f32 %v1012, %v1653
  %v1782 = vadd.f32 %v1013, %v1654
  %v1783 = vadd.f32 %v1014, %v1655
  %v1784 = vadd.f32 %v1015, %v1656
  %v1785 = vadd.f32 %v1016, %v1657
  %v1786 = vadd.f32 %v1017, %v1658
  %v1787 = vadd.f32 %v1018, %v1659
  %v1788 = vadd.f32 %v1019, %v1660
  %v1789 = vadd.f32 %v1020, %v1661
  %v1790 = vadd.f32 %v1021, %v1662
  %v1791 = vadd.f32 %v1022, %v1663
  %v1792 = vadd.f32 %v1023, %v1664
  %v1793 = vadd.f32 %v1024, %v1665
  %v1794 = vadd.f32 %v1025, %v1666
  %v1795 = vadd.f32 %v1026, %v1667
  %v1796 = vadd.f32 %v1027, %v1668
  %v1797 = vadd.f32 %v1028, %v1669
  %v1798 = vadd.f32 %v1029, %v1670
  %v1799 = vadd.f32 %v1030, %v1671
  %v1800 = vadd.f32 %v1031, %v1672
  %v1801 = vadd.f32 %v1032, %v1673
  %v1802 = vadd.f32 %v1033, %v1674
  %v1803 = vadd.f32 %v1034, %v1675
  %v1804 = vadd.f32 %v1035, %v1676
  %v1805 = vadd.f32 %v1036, %v1677
  %v1806 = vadd.f32 %v1037, %v1678
  %v1807 = vadd.f32 %v1038, %v1679
  %v1808 = vadd.f32 %v1039, %v1680
  %v1809 = vadd.f32 %v1040, %v1681
  %v1810 = vadd.f32 %v1041, %v1682
  %v1811 = vadd.f32 %v1042, %v1683
  %v1812 = vadd.f32 %v1043, %v1684
  %1813 = vset.pattern.permute.xlu0 2
  %1814 = vperm.xlu0 %1813, %v14
  %v1815 = vpop.permute.xlu0 %1814
  %1817 = vset.pattern.permute.xlu0 2
  %1818 = vperm.xlu0 %1817, %v15
  %v1819 = vpop.permute.xlu0 %1818
  %1821 = vset.pattern.permute.xlu0 2
  %1822 = vperm.xlu0 %1821, %v16
  %v1823 = vpop.permute.xlu0 %1822
  %1825 = vset.pattern.permute.xlu0 2
  %1826 = vperm.xlu0 %1825, %v17
  %v1827 = vpop.permute.xlu0 %1826
  %1829 = vset.pattern.permute.xlu0 2
  %1830 = vperm.xlu0 %1829, %v18
  %v1831 = vpop.permute.xlu0 %1830
  %1833 = vset.pattern.permute.xlu0 2
  %1834 = vperm.xlu0 %1833, %v19
  %v1835 = vpop.permute.xlu0 %1834
  %1837 = vset.pattern.permute.xlu0 2
  %1838 = vperm.xlu0 %1837, %v20
  %v1839 = vpop.permute.xlu0 %1838
  %1841 = vset.pattern.permute.xlu0 2
  %1842 = vperm.xlu0 %1841, %v21
  %v1843 = vpop.permute.xlu0 %1842
  %1845 = vset.pattern.permute.xlu0 2
  %1846 = vperm.xlu0 %1845, %v22
  %v1847 = vpop.permute.xlu0 %1846
  %1849 = vset.pattern.permute.xlu0 2
  %1850 = vperm.xlu0 %1849, %v23
  %v1851 = vpop.permute.xlu0 %1850
  %1853 = vset.pattern.permute.xlu0 2
  %1854 = vperm.xlu0 %1853, %v24
  %v1855 = vpop.permute.xlu0 %1854
  %1857 = vset.pattern.permute.xlu0 2
  %1858 = vperm.xlu0 %1857, %v25
  %v1859 = vpop.permute.xlu0 %1858
  %1861 = vset.pattern.permute.xlu0 2
  %1862 = vperm.xlu0 %1861, %v26
  %v1863 = vpop.permute.xlu0 %1862
  %1865 = vset.pattern.permute.xlu0 2
  %1866 = vperm.xlu0 %1865, %v27
  %v1867 = vpop.permute.xlu0 %1866
  %1869 = vset.pattern.permute.xlu0 2
  %1870 = vperm.xlu0 %1869, %v28
  %v1871 = vpop.permute.xlu0 %1870
  %1873 = vset.pattern.permute.xlu0 2
  %1874 = vperm.xlu0 %1873, %v29
  %v1875 = vpop.permute.xlu0 %1874
  %1877 = vset.pattern.permute.xlu0 2
  %1878 = vperm.xlu0 %1877, %v30
  %v1879 = vpop.permute.xlu0 %1878
  %1881 = vset.pattern.permute.xlu0 2
  %1882 = vperm.xlu0 %1881, %v31
  %v1883 = vpop.permute.xlu0 %1882
  %1885 = vset.pattern.permute.xlu0 2
  %1886 = vperm.xlu0 %1885, %v32
  %v1887 = vpop.permute.xlu0 %1886
  %1889 = vset.pattern.permute.xlu0 2
  %1890 = vperm.xlu0 %1889, %v33
  %v1891 = vpop.permute.xlu0 %1890
  %1893 = vset.pattern.permute.xlu0 2
  %1894 = vperm.xlu0 %1893, %v34
  %v1895 = vpop.permute.xlu0 %1894
  %1897 = vset.pattern.permute.xlu0 2
  %1898 = vperm.xlu0 %1897, %v35
  %v1899 = vpop.permute.xlu0 %1898
  %1901 = vset.pattern.permute.xlu0 2
  %1902 = vperm.xlu0 %1901, %v36
  %v1903 = vpop.permute.xlu0 %1902
  %1905 = vset.pattern.permute.xlu0 2
  %1906 = vperm.xlu0 %1905, %v37
  %v1907 = vpop.permute.xlu0 %1906
  %1909 = vset.pattern.permute.xlu0 2
  %1910 = vperm.xlu0 %1909, %v38
  %v1911 = vpop.permute.xlu0 %1910
  %1913 = vset.pattern.permute.xlu0 2
  %1914 = vperm.xlu0 %1913, %v39
  %v1915 = vpop.permute.xlu0 %1914
  %1917 = vset.pattern.permute.xlu0 2
  %1918 = vperm.xlu0 %1917, %v40
  %v1919 = vpop.permute.xlu0 %1918
  %1921 = vset.pattern.permute.xlu0 2
  %1922 = vperm.xlu0 %1921, %v41
  %v1923 = vpop.permute.xlu0 %1922
  %1925 = vset.pattern.permute.xlu0 2
  %1926 = vperm.xlu0 %1925, %v42
  %v1927 = vpop.permute.xlu0 %1926
  %1929 = vset.pattern.permute.xlu0 2
  %1930 = vperm.xlu0 %1929, %v43
  %v1931 = vpop.permute.xlu0 %1930
  %1933 = vset.pattern.permute.xlu0 2
  %1934 = vperm.xlu0 %1933, %v44
  %v1935 = vpop.permute.xlu0 %1934
  %1937 = vset.pattern.permute.xlu0 2
  %1938 = vperm.xlu0 %1937, %v45
  %v1939 = vpop.permute.xlu0 %1938
  %1941 = vset.pattern.permute.xlu0 2
  %1942 = vperm.xlu0 %1941, %v46
  %v1943 = vpop.permute.xlu0 %1942
  %1945 = vset.pattern.permute.xlu0 2
  %1946 = vperm.xlu0 %1945, %v47
  %v1947 = vpop.permute.xlu0 %1946
  %1949 = vset.pattern.permute.xlu0 2
  %1950 = vperm.xlu0 %1949, %v48
  %v1951 = vpop.permute.xlu0 %1950
  %1953 = vset.pattern.permute.xlu0 2
  %1954 = vperm.xlu0 %1953, %v49
  %v1955 = vpop.permute.xlu0 %1954
  %1957 = vset.pattern.permute.xlu0 2
  %1958 = vperm.xlu0 %1957, %v50
  %v1959 = vpop.permute.xlu0 %1958
  %1961 = vset.pattern.permute.xlu0 2
  %1962 = vperm.xlu0 %1961, %v51
  %v1963 = vpop.permute.xlu0 %1962
  %1965 = vset.pattern.permute.xlu0 2
  %1966 = vperm.xlu0 %1965, %v52
  %v1967 = vpop.permute.xlu0 %1966
  %1969 = vset.pattern.permute.xlu0 2
  %1970 = vperm.xlu0 %1969, %v53
  %v1971 = vpop.permute.xlu0 %1970
  %1973 = vset.pattern.permute.xlu0 2
  %1974 = vperm.xlu0 %1973, %v54
  %v1975 = vpop.permute.xlu0 %1974
  %1977 = vset.pattern.permute.xlu0 2
  %1978 = vperm.xlu0 %1977, %v55
  %v1979 = vpop.permute.xlu0 %1978
  %1981 = vset.pattern.permute.xlu0 2
  %1982 = vperm.xlu0 %1981, %v56
  %v1983 = vpop.permute.xlu0 %1982
  %1985 = vset.pattern.permute.xlu0 2
  %1986 = vperm.xlu0 %1985, %v57
  %v1987 = vpop.permute.xlu0 %1986
  %1989 = vset.pattern.permute.xlu0 2
  %1990 = vperm.xlu0 %1989, %v58
  %v1991 = vpop.permute.xlu0 %1990
  %1993 = vset.pattern.permute.xlu0 2
  %1994 = vperm.xlu0 %1993, %v59
  %v1995 = vpop.permute.xlu0 %1994
  %1997 = vset.pattern.permute.xlu0 2
  %1998 = vperm.xlu0 %1997, %v60
  %v1999 = vpop.permute.xlu0 %1998
  %2001 = vset.pattern.permute.xlu0 2
  %2002 = vperm.xlu0 %2001, %v61
  %v2003 = vpop.permute.xlu0 %2002
  %2005 = vset.pattern.permute.xlu0 2
  %2006 = vperm.xlu0 %2005, %v62
  %v2007 = vpop.permute.xlu0 %2006
  %2009 = vset.pattern.permute.xlu0 2
  %2010 = vperm.xlu0 %2009, %v63
  %v2011 = vpop.permute.xlu0 %2010
  %2013 = vset.pattern.permute.xlu0 2
  %2014 = vperm.xlu0 %2013, %v64
  %v2015 = vpop.permute.xlu0 %2014
  %2017 = vset.pattern.permute.xlu0 2
  %2018 = vperm.xlu0 %2017, %v65
  %v2019 = vpop.permute.xlu0 %2018
  %2021 = vset.pattern.permute.xlu0 2
  %2022 = vperm.xlu0 %2021, %v66
  %v2023 = vpop.permute.xlu0 %2022
  %2025 = vset.pattern.permute.xlu0 2
  %2026 = vperm.xlu0 %2025, %v67
  %v2027 = vpop.permute.xlu0 %2026
  %2029 = vset.pattern.permute.xlu0 2
  %2030 = vperm.xlu0 %2029, %v68
  %v2031 = vpop.permute.xlu0 %2030
  %2033 = vset.pattern.permute.xlu0 2
  %2034 = vperm.xlu0 %2033, %v69
  %v2035 = vpop.permute.xlu0 %2034
  %2037 = vset.pattern.permute.xlu0 2
  %2038 = vperm.xlu0 %2037, %v70
  %v2039 = vpop.permute.xlu0 %2038
  %2041 = vset.pattern.permute.xlu0 2
  %2042 = vperm.xlu0 %2041, %v71
  %v2043 = vpop.permute.xlu0 %2042
  %2045 = vset.pattern.permute.xlu0 2
  %2046 = vperm.xlu0 %2045, %v72
  %v2047 = vpop.permute.xlu0 %2046
  %2049 = vset.pattern.permute.xlu0 2
  %2050 = vperm.xlu0 %2049, %v73
  %v2051 = vpop.permute.xlu0 %2050
  %2053 = vset.pattern.permute.xlu0 2
  %2054 = vperm.xlu0 %2053, %v74
  %v2055 = vpop.permute.xlu0 %2054
  %2057 = vset.pattern.permute.xlu0 2
  %2058 = vperm.xlu0 %2057, %v75
  %v2059 = vpop.permute.xlu0 %2058
  %2061 = vset.pattern.permute.xlu0 2
  %2062 = vperm.xlu0 %2061, %v76
  %v2063 = vpop.permute.xlu0 %2062
  %2065 = vset.pattern.permute.xlu0 2
  %2066 = vperm.xlu0 %2065, %v77
  %v2067 = vpop.permute.xlu0 %2066
  %2069 = vset.pattern.permute.xlu0 2
  %2070 = vperm.xlu0 %2069, %v78
  %v2071 = vpop.permute.xlu0 %2070
  %2073 = vset.pattern.permute.xlu0 2
  %2074 = vperm.xlu0 %2073, %v79
  %v2075 = vpop.permute.xlu0 %2074
  %2077 = vset.pattern.permute.xlu0 2
  %2078 = vperm.xlu0 %2077, %v80
  %v2079 = vpop.permute.xlu0 %2078
  %2081 = vset.pattern.permute.xlu0 2
  %2082 = vperm.xlu0 %2081, %v81
  %v2083 = vpop.permute.xlu0 %2082
  %2085 = vset.pattern.permute.xlu0 2
  %2086 = vperm.xlu0 %2085, %v82
  %v2087 = vpop.permute.xlu0 %2086
  %2089 = vset.pattern.permute.xlu0 2
  %2090 = vperm.xlu0 %2089, %v83
  %v2091 = vpop.permute.xlu0 %2090
  %2093 = vset.pattern.permute.xlu0 2
  %2094 = vperm.xlu0 %2093, %v84
  %v2095 = vpop.permute.xlu0 %2094
  %2097 = vset.pattern.permute.xlu0 2
  %2098 = vperm.xlu0 %2097, %v85
  %v2099 = vpop.permute.xlu0 %2098
  %2101 = vset.pattern.permute.xlu0 2
  %2102 = vperm.xlu0 %2101, %v86
  %v2103 = vpop.permute.xlu0 %2102
  %2105 = vset.pattern.permute.xlu0 2
  %2106 = vperm.xlu0 %2105, %v87
  %v2107 = vpop.permute.xlu0 %2106
  %2109 = vset.pattern.permute.xlu0 2
  %2110 = vperm.xlu0 %2109, %v88
  %v2111 = vpop.permute.xlu0 %2110
  %2113 = vset.pattern.permute.xlu0 2
  %2114 = vperm.xlu0 %2113, %v89
  %v2115 = vpop.permute.xlu0 %2114
  %2117 = vset.pattern.permute.xlu0 2
  %2118 = vperm.xlu0 %2117, %v90
  %v2119 = vpop.permute.xlu0 %2118
  %2121 = vset.pattern.permute.xlu0 2
  %2122 = vperm.xlu0 %2121, %v91
  %v2123 = vpop.permute.xlu0 %2122
  %2125 = vset.pattern.permute.xlu0 2
  %2126 = vperm.xlu0 %2125, %v92
  %v2127 = vpop.permute.xlu0 %2126
  %2129 = vset.pattern.permute.xlu0 2
  %2130 = vperm.xlu0 %2129, %v93
  %v2131 = vpop.permute.xlu0 %2130
  %2133 = vset.pattern.permute.xlu0 2
  %2134 = vperm.xlu0 %2133, %v94
  %v2135 = vpop.permute.xlu0 %2134
  %2137 = vset.pattern.permute.xlu0 2
  %2138 = vperm.xlu0 %2137, %v95
  %v2139 = vpop.permute.xlu0 %2138
  %2141 = vset.pattern.permute.xlu0 2
  %2142 = vperm.xlu0 %2141, %v96
  %v2143 = vpop.permute.xlu0 %2142
  %2145 = vset.pattern.permute.xlu0 2
  %2146 = vperm.xlu0 %2145, %v97
  %v2147 = vpop.permute.xlu0 %2146
  %2149 = vset.pattern.permute.xlu0 2
  %2150 = vperm.xlu0 %2149, %v98
  %v2151 = vpop.permute.xlu0 %2150
  %2153 = vset.pattern.permute.xlu0 2
  %2154 = vperm.xlu0 %2153, %v99
  %v2155 = vpop.permute.xlu0 %2154
  %2157 = vset.pattern.permute.xlu0 2
  %2158 = vperm.xlu0 %2157, %v100
  %v2159 = vpop.permute.xlu0 %2158
  %2161 = vset.pattern.permute.xlu0 2
  %2162 = vperm.xlu0 %2161, %v101
  %v2163 = vpop.permute.xlu0 %2162
  %2165 = vset.pattern.permute.xlu0 2
  %2166 = vperm.xlu0 %2165, %v102
  %v2167 = vpop.permute.xlu0 %2166
  %2169 = vset.pattern.permute.xlu0 2
  %2170 = vperm.xlu0 %2169, %v103
  %v2171 = vpop.permute.xlu0 %2170
  %2173 = vset.pattern.permute.xlu0 2
  %2174 = vperm.xlu0 %2173, %v104
  %v2175 = vpop.permute.xlu0 %2174
  %2177 = vset.pattern.permute.xlu0 2
  %2178 = vperm.xlu0 %2177, %v105
  %v2179 = vpop.permute.xlu0 %2178
  %2181 = vset.pattern.permute.xlu0 2
  %2182 = vperm.xlu0 %2181, %v106
  %v2183 = vpop.permute.xlu0 %2182
  %2185 = vset.pattern.permute.xlu0 2
  %2186 = vperm.xlu0 %2185, %v107
  %v2187 = vpop.permute.xlu0 %2186
  %2189 = vset.pattern.permute.xlu0 2
  %2190 = vperm.xlu0 %2189, %v108
  %v2191 = vpop.permute.xlu0 %2190
  %2193 = vset.pattern.permute.xlu0 2
  %2194 = vperm.xlu0 %2193, %v109
  %v2195 = vpop.permute.xlu0 %2194
  %2197 = vset.pattern.permute.xlu0 2
  %2198 = vperm.xlu0 %2197, %v110
  %v2199 = vpop.permute.xlu0 %2198
  %2201 = vset.pattern.permute.xlu0 2
  %2202 = vperm.xlu0 %2201, %v111
  %v2203 = vpop.permute.xlu0 %2202
  %2205 = vset.pattern.permute.xlu0 2
  %2206 = vperm.xlu0 %2205, %v112
  %v2207 = vpop.permute.xlu0 %2206
  %2209 = vset.pattern.permute.xlu0 2
  %2210 = vperm.xlu0 %2209, %v113
  %v2211 = vpop.permute.xlu0 %2210
  %2213 = vset.pattern.permute.xlu0 2
  %2214 = vperm.xlu0 %2213, %v114
  %v2215 = vpop.permute.xlu0 %2214
  %2217 = vset.pattern.permute.xlu0 2
  %2218 = vperm.xlu0 %2217, %v115
  %v2219 = vpop.permute.xlu0 %2218
  %2221 = vset.pattern.permute.xlu0 2
  %2222 = vperm.xlu0 %2221, %v116
  %v2223 = vpop.permute.xlu0 %2222
  %2225 = vset.pattern.permute.xlu0 2
  %2226 = vperm.xlu0 %2225, %v117
  %v2227 = vpop.permute.xlu0 %2226
  %2229 = vset.pattern.permute.xlu0 2
  %2230 = vperm.xlu0 %2229, %v118
  %v2231 = vpop.permute.xlu0 %2230
  %2233 = vset.pattern.permute.xlu0 2
  %2234 = vperm.xlu0 %2233, %v119
  %v2235 = vpop.permute.xlu0 %2234
  %2237 = vset.pattern.permute.xlu0 2
  %2238 = vperm.xlu0 %2237, %v120
  %v2239 = vpop.permute.xlu0 %2238
  %2241 = vset.pattern.permute.xlu0 2
  %2242 = vperm.xlu0 %2241, %v121
  %v2243 = vpop.permute.xlu0 %2242
  %2245 = vset.pattern.permute.xlu0 2
  %2246 = vperm.xlu0 %2245, %v122
  %v2247 = vpop.permute.xlu0 %2246
  %2249 = vset.pattern.permute.xlu0 2
  %2250 = vperm.xlu0 %2249, %v123
  %v2251 = vpop.permute.xlu0 %2250
  %2253 = vset.pattern.permute.xlu0 2
  %2254 = vperm.xlu0 %2253, %v124
  %v2255 = vpop.permute.xlu0 %2254
  %2257 = vset.pattern.permute.xlu0 2
  %2258 = vperm.xlu0 %2257, %v125
  %v2259 = vpop.permute.xlu0 %2258
  %2261 = vset.pattern.permute.xlu0 2
  %2262 = vperm.xlu0 %2261, %v126
  %v2263 = vpop.permute.xlu0 %2262
  %2265 = vset.pattern.permute.xlu0 2
  %2266 = vperm.xlu0 %2265, %v127
  %v2267 = vpop.permute.xlu0 %2266
  %2269 = vset.pattern.permute.xlu0 2
  %2270 = vperm.xlu0 %2269, %v128
  %v2271 = vpop.permute.xlu0 %2270
  %2273 = vset.pattern.permute.xlu0 2
  %2274 = vperm.xlu0 %2273, %v129
  %v2275 = vpop.permute.xlu0 %2274
  %2277 = vset.pattern.permute.xlu0 2
  %2278 = vperm.xlu0 %2277, %v130
  %v2279 = vpop.permute.xlu0 %2278
  %2281 = vset.pattern.permute.xlu0 2
  %2282 = vperm.xlu0 %2281, %v131
  %v2283 = vpop.permute.xlu0 %2282
  %2285 = vset.pattern.permute.xlu0 2
  %2286 = vperm.xlu0 %2285, %v132
  %v2287 = vpop.permute.xlu0 %2286
  %2289 = vset.pattern.permute.xlu0 2
  %2290 = vperm.xlu0 %2289, %v133
  %v2291 = vpop.permute.xlu0 %2290
  %2293 = vset.pattern.permute.xlu0 2
  %2294 = vperm.xlu0 %2293, %v134
  %v2295 = vpop.permute.xlu0 %2294
  %2297 = vset.pattern.permute.xlu0 2
  %2298 = vperm.xlu0 %2297, %v135
  %v2299 = vpop.permute.xlu0 %2298
  %2301 = vset.pattern.permute.xlu0 2
  %2302 = vperm.xlu0 %2301, %v136
  %v2303 = vpop.permute.xlu0 %2302
  %2305 = vset.pattern.permute.xlu0 2
  %2306 = vperm.xlu0 %2305, %v137
  %v2307 = vpop.permute.xlu0 %2306
  %2309 = vset.pattern.permute.xlu0 2
  %2310 = vperm.xlu0 %2309, %v138
  %v2311 = vpop.permute.xlu0 %2310
  %2313 = vset.pattern.permute.xlu0 2
  %2314 = vperm.xlu0 %2313, %v139
  %v2315 = vpop.permute.xlu0 %2314
  %2317 = vset.pattern.permute.xlu0 2
  %2318 = vperm.xlu0 %2317, %v140
  %v2319 = vpop.permute.xlu0 %2318
  %2321 = vset.pattern.permute.xlu0 2
  %2322 = vperm.xlu0 %2321, %v141
  %v2323 = vpop.permute.xlu0 %2322
  %v2325 = vperm.slane %v142, 2
  %v2326 = vmul.f32 %v1815, %v2325
  %v2327 = vmul.f32 %v1819, %v2325
  %v2328 = vmul.f32 %v1823, %v2325
  %v2329 = vmul.f32 %v1827, %v2325
  %v2330 = vmul.f32 %v1831, %v2325
  %v2331 = vmul.f32 %v1835, %v2325
  %v2332 = vmul.f32 %v1839, %v2325
  %v2333 = vmul.f32 %v1843, %v2325
  %v2334 = vmul.f32 %v1847, %v2325
  %v2335 = vmul.f32 %v1851, %v2325
  %v2336 = vmul.f32 %v1855, %v2325
  %v2337 = vmul.f32 %v1859, %v2325
  %v2338 = vmul.f32 %v1863, %v2325
  %v2339 = vmul.f32 %v1867, %v2325
  %v2340 = vmul.f32 %v1871, %v2325
  %v2341 = vmul.f32 %v1875, %v2325
  %v2342 = vmul.f32 %v1879, %v2325
  %v2343 = vmul.f32 %v1883, %v2325
  %v2344 = vmul.f32 %v1887, %v2325
  %v2345 = vmul.f32 %v1891, %v2325
  %v2346 = vmul.f32 %v1895, %v2325
  %v2347 = vmul.f32 %v1899, %v2325
  %v2348 = vmul.f32 %v1903, %v2325
  %v2349 = vmul.f32 %v1907, %v2325
  %v2350 = vmul.f32 %v1911, %v2325
  %v2351 = vmul.f32 %v1915, %v2325
  %v2352 = vmul.f32 %v1919, %v2325
  %v2353 = vmul.f32 %v1923, %v2325
  %v2354 = vmul.f32 %v1927, %v2325
  %v2355 = vmul.f32 %v1931, %v2325
  %v2356 = vmul.f32 %v1935, %v2325
  %v2357 = vmul.f32 %v1939, %v2325
  %v2358 = vmul.f32 %v1943, %v2325
  %v2359 = vmul.f32 %v1947, %v2325
  %v2360 = vmul.f32 %v1951, %v2325
  %v2361 = vmul.f32 %v1955, %v2325
  %v2362 = vmul.f32 %v1959, %v2325
  %v2363 = vmul.f32 %v1963, %v2325
  %v2364 = vmul.f32 %v1967, %v2325
  %v2365 = vmul.f32 %v1971, %v2325
  %v2366 = vmul.f32 %v1975, %v2325
  %v2367 = vmul.f32 %v1979, %v2325
  %v2368 = vmul.f32 %v1983, %v2325
  %v2369 = vmul.f32 %v1987, %v2325
  %v2370 = vmul.f32 %v1991, %v2325
  %v2371 = vmul.f32 %v1995, %v2325
  %v2372 = vmul.f32 %v1999, %v2325
  %v2373 = vmul.f32 %v2003, %v2325
  %v2374 = vmul.f32 %v2007, %v2325
  %v2375 = vmul.f32 %v2011, %v2325
  %v2376 = vmul.f32 %v2015, %v2325
  %v2377 = vmul.f32 %v2019, %v2325
  %v2378 = vmul.f32 %v2023, %v2325
  %v2379 = vmul.f32 %v2027, %v2325
  %v2380 = vmul.f32 %v2031, %v2325
  %v2381 = vmul.f32 %v2035, %v2325
  %v2382 = vmul.f32 %v2039, %v2325
  %v2383 = vmul.f32 %v2043, %v2325
  %v2384 = vmul.f32 %v2047, %v2325
  %v2385 = vmul.f32 %v2051, %v2325
  %v2386 = vmul.f32 %v2055, %v2325
  %v2387 = vmul.f32 %v2059, %v2325
  %v2388 = vmul.f32 %v2063, %v2325
  %v2389 = vmul.f32 %v2067, %v2325
  %v2390 = vmul.f32 %v2071, %v2325
  %v2391 = vmul.f32 %v2075, %v2325
  %v2392 = vmul.f32 %v2079, %v2325
  %v2393 = vmul.f32 %v2083, %v2325
  %v2394 = vmul.f32 %v2087, %v2325
  %v2395 = vmul.f32 %v2091, %v2325
  %v2396 = vmul.f32 %v2095, %v2325
  %v2397 = vmul.f32 %v2099, %v2325
  %v2398 = vmul.f32 %v2103, %v2325
  %v2399 = vmul.f32 %v2107, %v2325
  %v2400 = vmul.f32 %v2111, %v2325
  %v2401 = vmul.f32 %v2115, %v2325
  %v2402 = vmul.f32 %v2119, %v2325
  %v2403 = vmul.f32 %v2123, %v2325
  %v2404 = vmul.f32 %v2127, %v2325
  %v2405 = vmul.f32 %v2131, %v2325
  %v2406 = vmul.f32 %v2135, %v2325
  %v2407 = vmul.f32 %v2139, %v2325
  %v2408 = vmul.f32 %v2143, %v2325
  %v2409 = vmul.f32 %v2147, %v2325
  %v2410 = vmul.f32 %v2151, %v2325
  %v2411 = vmul.f32 %v2155, %v2325
  %v2412 = vmul.f32 %v2159, %v2325
  %v2413 = vmul.f32 %v2163, %v2325
  %v2414 = vmul.f32 %v2167, %v2325
  %v2415 = vmul.f32 %v2171, %v2325
  %v2416 = vmul.f32 %v2175, %v2325
  %v2417 = vmul.f32 %v2179, %v2325
  %v2418 = vmul.f32 %v2183, %v2325
  %v2419 = vmul.f32 %v2187, %v2325
  %v2420 = vmul.f32 %v2191, %v2325
  %v2421 = vmul.f32 %v2195, %v2325
  %v2422 = vmul.f32 %v2199, %v2325
  %v2423 = vmul.f32 %v2203, %v2325
  %v2424 = vmul.f32 %v2207, %v2325
  %v2425 = vmul.f32 %v2211, %v2325
  %v2426 = vmul.f32 %v2215, %v2325
  %v2427 = vmul.f32 %v2219, %v2325
  %v2428 = vmul.f32 %v2223, %v2325
  %v2429 = vmul.f32 %v2227, %v2325
  %v2430 = vmul.f32 %v2231, %v2325
  %v2431 = vmul.f32 %v2235, %v2325
  %v2432 = vmul.f32 %v2239, %v2325
  %v2433 = vmul.f32 %v2243, %v2325
  %v2434 = vmul.f32 %v2247, %v2325
  %v2435 = vmul.f32 %v2251, %v2325
  %v2436 = vmul.f32 %v2255, %v2325
  %v2437 = vmul.f32 %v2259, %v2325
  %v2438 = vmul.f32 %v2263, %v2325
  %v2439 = vmul.f32 %v2267, %v2325
  %v2440 = vmul.f32 %v2271, %v2325
  %v2441 = vmul.f32 %v2275, %v2325
  %v2442 = vmul.f32 %v2279, %v2325
  %v2443 = vmul.f32 %v2283, %v2325
  %v2444 = vmul.f32 %v2287, %v2325
  %v2445 = vmul.f32 %v2291, %v2325
  %v2446 = vmul.f32 %v2295, %v2325
  %v2447 = vmul.f32 %v2299, %v2325
  %v2448 = vmul.f32 %v2303, %v2325
  %v2449 = vmul.f32 %v2307, %v2325
  %v2450 = vmul.f32 %v2311, %v2325
  %v2451 = vmul.f32 %v2315, %v2325
  %v2452 = vmul.f32 %v2319, %v2325
  %v2453 = vmul.f32 %v2323, %v2325
  %v2454 = vadd.f32 %v1685, %v2326
  %v2455 = vadd.f32 %v1686, %v2327
  %v2456 = vadd.f32 %v1687, %v2328
  %v2457 = vadd.f32 %v1688, %v2329
  %v2458 = vadd.f32 %v1689, %v2330
  %v2459 = vadd.f32 %v1690, %v2331
  %v2460 = vadd.f32 %v1691, %v2332
  %v2461 = vadd.f32 %v1692, %v2333
  %v2462 = vadd.f32 %v1693, %v2334
  %v2463 = vadd.f32 %v1694, %v2335
  %v2464 = vadd.f32 %v1695, %v2336
  %v2465 = vadd.f32 %v1696, %v2337
  %v2466 = vadd.f32 %v1697, %v2338
  %v2467 = vadd.f32 %v1698, %v2339
  %v2468 = vadd.f32 %v1699, %v2340
  %v2469 = vadd.f32 %v1700, %v2341
  %v2470 = vadd.f32 %v1701, %v2342
  %v2471 = vadd.f32 %v1702, %v2343
  %v2472 = vadd.f32 %v1703, %v2344
  %v2473 = vadd.f32 %v1704, %v2345
  %v2474 = vadd.f32 %v1705, %v2346
  %v2475 = vadd.f32 %v1706, %v2347
  %v2476 = vadd.f32 %v1707, %v2348
  %v2477 = vadd.f32 %v1708, %v2349
  %v2478 = vadd.f32 %v1709, %v2350
  %v2479 = vadd.f32 %v1710, %v2351
  %v2480 = vadd.f32 %v1711, %v2352
  %v2481 = vadd.f32 %v1712, %v2353
  %v2482 = vadd.f32 %v1713, %v2354
  %v2483 = vadd.f32 %v1714, %v2355
  %v2484 = vadd.f32 %v1715, %v2356
  %v2485 = vadd.f32 %v1716, %v2357
  %v2486 = vadd.f32 %v1717, %v2358
  %v2487 = vadd.f32 %v1718, %v2359
  %v2488 = vadd.f32 %v1719, %v2360
  %v2489 = vadd.f32 %v1720, %v2361
  %v2490 = vadd.f32 %v1721, %v2362
  %v2491 = vadd.f32 %v1722, %v2363
  %v2492 = vadd.f32 %v1723, %v2364
  %v2493 = vadd.f32 %v1724, %v2365
  %v2494 = vadd.f32 %v1725, %v2366
  %v2495 = vadd.f32 %v1726, %v2367
  %v2496 = vadd.f32 %v1727, %v2368
  %v2497 = vadd.f32 %v1728, %v2369
  %v2498 = vadd.f32 %v1729, %v2370
  %v2499 = vadd.f32 %v1730, %v2371
  %v2500 = vadd.f32 %v1731, %v2372
  %v2501 = vadd.f32 %v1732, %v2373
  %v2502 = vadd.f32 %v1733, %v2374
  %v2503 = vadd.f32 %v1734, %v2375
  %v2504 = vadd.f32 %v1735, %v2376
  %v2505 = vadd.f32 %v1736, %v2377
  %v2506 = vadd.f32 %v1737, %v2378
  %v2507 = vadd.f32 %v1738, %v2379
  %v2508 = vadd.f32 %v1739, %v2380
  %v2509 = vadd.f32 %v1740, %v2381
  %v2510 = vadd.f32 %v1741, %v2382
  %v2511 = vadd.f32 %v1742, %v2383
  %v2512 = vadd.f32 %v1743, %v2384
  %v2513 = vadd.f32 %v1744, %v2385
  %v2514 = vadd.f32 %v1745, %v2386
  %v2515 = vadd.f32 %v1746, %v2387
  %v2516 = vadd.f32 %v1747, %v2388
  %v2517 = vadd.f32 %v1748, %v2389
  %v2518 = vadd.f32 %v1749, %v2390
  %v2519 = vadd.f32 %v1750, %v2391
  %v2520 = vadd.f32 %v1751, %v2392
  %v2521 = vadd.f32 %v1752, %v2393
  %v2522 = vadd.f32 %v1753, %v2394
  %v2523 = vadd.f32 %v1754, %v2395
  %v2524 = vadd.f32 %v1755, %v2396
  %v2525 = vadd.f32 %v1756, %v2397
  %v2526 = vadd.f32 %v1757, %v2398
  %v2527 = vadd.f32 %v1758, %v2399
  %v2528 = vadd.f32 %v1759, %v2400
  %v2529 = vadd.f32 %v1760, %v2401
  %v2530 = vadd.f32 %v1761, %v2402
  %v2531 = vadd.f32 %v1762, %v2403
  %v2532 = vadd.f32 %v1763, %v2404
  %v2533 = vadd.f32 %v1764, %v2405
  %v2534 = vadd.f32 %v1765, %v2406
  %v2535 = vadd.f32 %v1766, %v2407
  %v2536 = vadd.f32 %v1767, %v2408
  %v2537 = vadd.f32 %v1768, %v2409
  %v2538 = vadd.f32 %v1769, %v2410
  %v2539 = vadd.f32 %v1770, %v2411
  %v2540 = vadd.f32 %v1771, %v2412
  %v2541 = vadd.f32 %v1772, %v2413
  %v2542 = vadd.f32 %v1773, %v2414
  %v2543 = vadd.f32 %v1774, %v2415
  %v2544 = vadd.f32 %v1775, %v2416
  %v2545 = vadd.f32 %v1776, %v2417
  %v2546 = vadd.f32 %v1777, %v2418
  %v2547 = vadd.f32 %v1778, %v2419
  %v2548 = vadd.f32 %v1779, %v2420
  %v2549 = vadd.f32 %v1780, %v2421
  %v2550 = vadd.f32 %v1781, %v2422
  %v2551 = vadd.f32 %v1782, %v2423
  %v2552 = vadd.f32 %v1783, %v2424
  %v2553 = vadd.f32 %v1784, %v2425
  %v2554 = vadd.f32 %v1785, %v2426
  %v2555 = vadd.f32 %v1786, %v2427
  %v2556 = vadd.f32 %v1787, %v2428
  %v2557 = vadd.f32 %v1788, %v2429
  %v2558 = vadd.f32 %v1789, %v2430
  %v2559 = vadd.f32 %v1790, %v2431
  %v2560 = vadd.f32 %v1791, %v2432
  %v2561 = vadd.f32 %v1792, %v2433
  %v2562 = vadd.f32 %v1793, %v2434
  %v2563 = vadd.f32 %v1794, %v2435
  %v2564 = vadd.f32 %v1795, %v2436
  %v2565 = vadd.f32 %v1796, %v2437
  %v2566 = vadd.f32 %v1797, %v2438
  %v2567 = vadd.f32 %v1798, %v2439
  %v2568 = vadd.f32 %v1799, %v2440
  %v2569 = vadd.f32 %v1800, %v2441
  %v2570 = vadd.f32 %v1801, %v2442
  %v2571 = vadd.f32 %v1802, %v2443
  %v2572 = vadd.f32 %v1803, %v2444
  %v2573 = vadd.f32 %v1804, %v2445
  %v2574 = vadd.f32 %v1805, %v2446
  %v2575 = vadd.f32 %v1806, %v2447
  %v2576 = vadd.f32 %v1807, %v2448
  %v2577 = vadd.f32 %v1808, %v2449
  %v2578 = vadd.f32 %v1809, %v2450
  %v2579 = vadd.f32 %v1810, %v2451
  %v2580 = vadd.f32 %v1811, %v2452
  %v2581 = vadd.f32 %v1812, %v2453
  %2582 = vset.pattern.permute.xlu0 3
  %2583 = vperm.xlu0 %2582, %v14
  %v2584 = vpop.permute.xlu0 %2583
  %2586 = vset.pattern.permute.xlu0 3
  %2587 = vperm.xlu0 %2586, %v15
  %v2588 = vpop.permute.xlu0 %2587
  %2590 = vset.pattern.permute.xlu0 3
  %2591 = vperm.xlu0 %2590, %v16
  %v2592 = vpop.permute.xlu0 %2591
  %2594 = vset.pattern.permute.xlu0 3
  %2595 = vperm.xlu0 %2594, %v17
  %v2596 = vpop.permute.xlu0 %2595
  %2598 = vset.pattern.permute.xlu0 3
  %2599 = vperm.xlu0 %2598, %v18
  %v2600 = vpop.permute.xlu0 %2599
  %2602 = vset.pattern.permute.xlu0 3
  %2603 = vperm.xlu0 %2602, %v19
  %v2604 = vpop.permute.xlu0 %2603
  %2606 = vset.pattern.permute.xlu0 3
  %2607 = vperm.xlu0 %2606, %v20
  %v2608 = vpop.permute.xlu0 %2607
  %2610 = vset.pattern.permute.xlu0 3
  %2611 = vperm.xlu0 %2610, %v21
  %v2612 = vpop.permute.xlu0 %2611
  %2614 = vset.pattern.permute.xlu0 3
  %2615 = vperm.xlu0 %2614, %v22
  %v2616 = vpop.permute.xlu0 %2615
  %2618 = vset.pattern.permute.xlu0 3
  %2619 = vperm.xlu0 %2618, %v23
  %v2620 = vpop.permute.xlu0 %2619
  %2622 = vset.pattern.permute.xlu0 3
  %2623 = vperm.xlu0 %2622, %v24
  %v2624 = vpop.permute.xlu0 %2623
  %2626 = vset.pattern.permute.xlu0 3
  %2627 = vperm.xlu0 %2626, %v25
  %v2628 = vpop.permute.xlu0 %2627
  %2630 = vset.pattern.permute.xlu0 3
  %2631 = vperm.xlu0 %2630, %v26
  %v2632 = vpop.permute.xlu0 %2631
  %2634 = vset.pattern.permute.xlu0 3
  %2635 = vperm.xlu0 %2634, %v27
  %v2636 = vpop.permute.xlu0 %2635
  %2638 = vset.pattern.permute.xlu0 3
  %2639 = vperm.xlu0 %2638, %v28
  %v2640 = vpop.permute.xlu0 %2639
  %2642 = vset.pattern.permute.xlu0 3
  %2643 = vperm.xlu0 %2642, %v29
  %v2644 = vpop.permute.xlu0 %2643
  %2646 = vset.pattern.permute.xlu0 3
  %2647 = vperm.xlu0 %2646, %v30
  %v2648 = vpop.permute.xlu0 %2647
  %2650 = vset.pattern.permute.xlu0 3
  %2651 = vperm.xlu0 %2650, %v31
  %v2652 = vpop.permute.xlu0 %2651
  %2654 = vset.pattern.permute.xlu0 3
  %2655 = vperm.xlu0 %2654, %v32
  %v2656 = vpop.permute.xlu0 %2655
  %2658 = vset.pattern.permute.xlu0 3
  %2659 = vperm.xlu0 %2658, %v33
  %v2660 = vpop.permute.xlu0 %2659
  %2662 = vset.pattern.permute.xlu0 3
  %2663 = vperm.xlu0 %2662, %v34
  %v2664 = vpop.permute.xlu0 %2663
  %2666 = vset.pattern.permute.xlu0 3
  %2667 = vperm.xlu0 %2666, %v35
  %v2668 = vpop.permute.xlu0 %2667
  %2670 = vset.pattern.permute.xlu0 3
  %2671 = vperm.xlu0 %2670, %v36
  %v2672 = vpop.permute.xlu0 %2671
  %2674 = vset.pattern.permute.xlu0 3
  %2675 = vperm.xlu0 %2674, %v37
  %v2676 = vpop.permute.xlu0 %2675
  %2678 = vset.pattern.permute.xlu0 3
  %2679 = vperm.xlu0 %2678, %v38
  %v2680 = vpop.permute.xlu0 %2679
  %2682 = vset.pattern.permute.xlu0 3
  %2683 = vperm.xlu0 %2682, %v39
  %v2684 = vpop.permute.xlu0 %2683
  %2686 = vset.pattern.permute.xlu0 3
  %2687 = vperm.xlu0 %2686, %v40
  %v2688 = vpop.permute.xlu0 %2687
  %2690 = vset.pattern.permute.xlu0 3
  %2691 = vperm.xlu0 %2690, %v41
  %v2692 = vpop.permute.xlu0 %2691
  %2694 = vset.pattern.permute.xlu0 3
  %2695 = vperm.xlu0 %2694, %v42
  %v2696 = vpop.permute.xlu0 %2695
  %2698 = vset.pattern.permute.xlu0 3
  %2699 = vperm.xlu0 %2698, %v43
  %v2700 = vpop.permute.xlu0 %2699
  %2702 = vset.pattern.permute.xlu0 3
  %2703 = vperm.xlu0 %2702, %v44
  %v2704 = vpop.permute.xlu0 %2703
  %2706 = vset.pattern.permute.xlu0 3
  %2707 = vperm.xlu0 %2706, %v45
  %v2708 = vpop.permute.xlu0 %2707
  %2710 = vset.pattern.permute.xlu0 3
  %2711 = vperm.xlu0 %2710, %v46
  %v2712 = vpop.permute.xlu0 %2711
  %2714 = vset.pattern.permute.xlu0 3
  %2715 = vperm.xlu0 %2714, %v47
  %v2716 = vpop.permute.xlu0 %2715
  %2718 = vset.pattern.permute.xlu0 3
  %2719 = vperm.xlu0 %2718, %v48
  %v2720 = vpop.permute.xlu0 %2719
  %2722 = vset.pattern.permute.xlu0 3
  %2723 = vperm.xlu0 %2722, %v49
  %v2724 = vpop.permute.xlu0 %2723
  %2726 = vset.pattern.permute.xlu0 3
  %2727 = vperm.xlu0 %2726, %v50
  %v2728 = vpop.permute.xlu0 %2727
  %2730 = vset.pattern.permute.xlu0 3
  %2731 = vperm.xlu0 %2730, %v51
  %v2732 = vpop.permute.xlu0 %2731
  %2734 = vset.pattern.permute.xlu0 3
  %2735 = vperm.xlu0 %2734, %v52
  %v2736 = vpop.permute.xlu0 %2735
  %2738 = vset.pattern.permute.xlu0 3
  %2739 = vperm.xlu0 %2738, %v53
  %v2740 = vpop.permute.xlu0 %2739
  %2742 = vset.pattern.permute.xlu0 3
  %2743 = vperm.xlu0 %2742, %v54
  %v2744 = vpop.permute.xlu0 %2743
  %2746 = vset.pattern.permute.xlu0 3
  %2747 = vperm.xlu0 %2746, %v55
  %v2748 = vpop.permute.xlu0 %2747
  %2750 = vset.pattern.permute.xlu0 3
  %2751 = vperm.xlu0 %2750, %v56
  %v2752 = vpop.permute.xlu0 %2751
  %2754 = vset.pattern.permute.xlu0 3
  %2755 = vperm.xlu0 %2754, %v57
  %v2756 = vpop.permute.xlu0 %2755
  %2758 = vset.pattern.permute.xlu0 3
  %2759 = vperm.xlu0 %2758, %v58
  %v2760 = vpop.permute.xlu0 %2759
  %2762 = vset.pattern.permute.xlu0 3
  %2763 = vperm.xlu0 %2762, %v59
  %v2764 = vpop.permute.xlu0 %2763
  %2766 = vset.pattern.permute.xlu0 3
  %2767 = vperm.xlu0 %2766, %v60
  %v2768 = vpop.permute.xlu0 %2767
  %2770 = vset.pattern.permute.xlu0 3
  %2771 = vperm.xlu0 %2770, %v61
  %v2772 = vpop.permute.xlu0 %2771
  %2774 = vset.pattern.permute.xlu0 3
  %2775 = vperm.xlu0 %2774, %v62
  %v2776 = vpop.permute.xlu0 %2775
  %2778 = vset.pattern.permute.xlu0 3
  %2779 = vperm.xlu0 %2778, %v63
  %v2780 = vpop.permute.xlu0 %2779
  %2782 = vset.pattern.permute.xlu0 3
  %2783 = vperm.xlu0 %2782, %v64
  %v2784 = vpop.permute.xlu0 %2783
  %2786 = vset.pattern.permute.xlu0 3
  %2787 = vperm.xlu0 %2786, %v65
  %v2788 = vpop.permute.xlu0 %2787
  %2790 = vset.pattern.permute.xlu0 3
  %2791 = vperm.xlu0 %2790, %v66
  %v2792 = vpop.permute.xlu0 %2791
  %2794 = vset.pattern.permute.xlu0 3
  %2795 = vperm.xlu0 %2794, %v67
  %v2796 = vpop.permute.xlu0 %2795
  %2798 = vset.pattern.permute.xlu0 3
  %2799 = vperm.xlu0 %2798, %v68
  %v2800 = vpop.permute.xlu0 %2799
  %2802 = vset.pattern.permute.xlu0 3
  %2803 = vperm.xlu0 %2802, %v69
  %v2804 = vpop.permute.xlu0 %2803
  %2806 = vset.pattern.permute.xlu0 3
  %2807 = vperm.xlu0 %2806, %v70
  %v2808 = vpop.permute.xlu0 %2807
  %2810 = vset.pattern.permute.xlu0 3
  %2811 = vperm.xlu0 %2810, %v71
  %v2812 = vpop.permute.xlu0 %2811
  %2814 = vset.pattern.permute.xlu0 3
  %2815 = vperm.xlu0 %2814, %v72
  %v2816 = vpop.permute.xlu0 %2815
  %2818 = vset.pattern.permute.xlu0 3
  %2819 = vperm.xlu0 %2818, %v73
  %v2820 = vpop.permute.xlu0 %2819
  %2822 = vset.pattern.permute.xlu0 3
  %2823 = vperm.xlu0 %2822, %v74
  %v2824 = vpop.permute.xlu0 %2823
  %2826 = vset.pattern.permute.xlu0 3
  %2827 = vperm.xlu0 %2826, %v75
  %v2828 = vpop.permute.xlu0 %2827
  %2830 = vset.pattern.permute.xlu0 3
  %2831 = vperm.xlu0 %2830, %v76
  %v2832 = vpop.permute.xlu0 %2831
  %2834 = vset.pattern.permute.xlu0 3
  %2835 = vperm.xlu0 %2834, %v77
  %v2836 = vpop.permute.xlu0 %2835
  %2838 = vset.pattern.permute.xlu0 3
  %2839 = vperm.xlu0 %2838, %v78
  %v2840 = vpop.permute.xlu0 %2839
  %2842 = vset.pattern.permute.xlu0 3
  %2843 = vperm.xlu0 %2842, %v79
  %v2844 = vpop.permute.xlu0 %2843
  %2846 = vset.pattern.permute.xlu0 3
  %2847 = vperm.xlu0 %2846, %v80
  %v2848 = vpop.permute.xlu0 %2847
  %2850 = vset.pattern.permute.xlu0 3
  %2851 = vperm.xlu0 %2850, %v81
  %v2852 = vpop.permute.xlu0 %2851
  %2854 = vset.pattern.permute.xlu0 3
  %2855 = vperm.xlu0 %2854, %v82
  %v2856 = vpop.permute.xlu0 %2855
  %2858 = vset.pattern.permute.xlu0 3
  %2859 = vperm.xlu0 %2858, %v83
  %v2860 = vpop.permute.xlu0 %2859
  %2862 = vset.pattern.permute.xlu0 3
  %2863 = vperm.xlu0 %2862, %v84
  %v2864 = vpop.permute.xlu0 %2863
  %2866 = vset.pattern.permute.xlu0 3
  %2867 = vperm.xlu0 %2866, %v85
  %v2868 = vpop.permute.xlu0 %2867
  %2870 = vset.pattern.permute.xlu0 3
  %2871 = vperm.xlu0 %2870, %v86
  %v2872 = vpop.permute.xlu0 %2871
  %2874 = vset.pattern.permute.xlu0 3
  %2875 = vperm.xlu0 %2874, %v87
  %v2876 = vpop.permute.xlu0 %2875
  %2878 = vset.pattern.permute.xlu0 3
  %2879 = vperm.xlu0 %2878, %v88
  %v2880 = vpop.permute.xlu0 %2879
  %2882 = vset.pattern.permute.xlu0 3
  %2883 = vperm.xlu0 %2882, %v89
  %v2884 = vpop.permute.xlu0 %2883
  %2886 = vset.pattern.permute.xlu0 3
  %2887 = vperm.xlu0 %2886, %v90
  %v2888 = vpop.permute.xlu0 %2887
  %2890 = vset.pattern.permute.xlu0 3
  %2891 = vperm.xlu0 %2890, %v91
  %v2892 = vpop.permute.xlu0 %2891
  %2894 = vset.pattern.permute.xlu0 3
  %2895 = vperm.xlu0 %2894, %v92
  %v2896 = vpop.permute.xlu0 %2895
  %2898 = vset.pattern.permute.xlu0 3
  %2899 = vperm.xlu0 %2898, %v93
  %v2900 = vpop.permute.xlu0 %2899
  %2902 = vset.pattern.permute.xlu0 3
  %2903 = vperm.xlu0 %2902, %v94
  %v2904 = vpop.permute.xlu0 %2903
  %2906 = vset.pattern.permute.xlu0 3
  %2907 = vperm.xlu0 %2906, %v95
  %v2908 = vpop.permute.xlu0 %2907
  %2910 = vset.pattern.permute.xlu0 3
  %2911 = vperm.xlu0 %2910, %v96
  %v2912 = vpop.permute.xlu0 %2911
  %2914 = vset.pattern.permute.xlu0 3
  %2915 = vperm.xlu0 %2914, %v97
  %v2916 = vpop.permute.xlu0 %2915
  %2918 = vset.pattern.permute.xlu0 3
  %2919 = vperm.xlu0 %2918, %v98
  %v2920 = vpop.permute.xlu0 %2919
  %2922 = vset.pattern.permute.xlu0 3
  %2923 = vperm.xlu0 %2922, %v99
  %v2924 = vpop.permute.xlu0 %2923
  %2926 = vset.pattern.permute.xlu0 3
  %2927 = vperm.xlu0 %2926, %v100
  %v2928 = vpop.permute.xlu0 %2927
  %2930 = vset.pattern.permute.xlu0 3
  %2931 = vperm.xlu0 %2930, %v101
  %v2932 = vpop.permute.xlu0 %2931
  %2934 = vset.pattern.permute.xlu0 3
  %2935 = vperm.xlu0 %2934, %v102
  %v2936 = vpop.permute.xlu0 %2935
  %2938 = vset.pattern.permute.xlu0 3
  %2939 = vperm.xlu0 %2938, %v103
  %v2940 = vpop.permute.xlu0 %2939
  %2942 = vset.pattern.permute.xlu0 3
  %2943 = vperm.xlu0 %2942, %v104
  %v2944 = vpop.permute.xlu0 %2943
  %2946 = vset.pattern.permute.xlu0 3
  %2947 = vperm.xlu0 %2946, %v105
  %v2948 = vpop.permute.xlu0 %2947
  %2950 = vset.pattern.permute.xlu0 3
  %2951 = vperm.xlu0 %2950, %v106
  %v2952 = vpop.permute.xlu0 %2951
  %2954 = vset.pattern.permute.xlu0 3
  %2955 = vperm.xlu0 %2954, %v107
  %v2956 = vpop.permute.xlu0 %2955
  %2958 = vset.pattern.permute.xlu0 3
  %2959 = vperm.xlu0 %2958, %v108
  %v2960 = vpop.permute.xlu0 %2959
  %2962 = vset.pattern.permute.xlu0 3
  %2963 = vperm.xlu0 %2962, %v109
  %v2964 = vpop.permute.xlu0 %2963
  %2966 = vset.pattern.permute.xlu0 3
  %2967 = vperm.xlu0 %2966, %v110
  %v2968 = vpop.permute.xlu0 %2967
  %2970 = vset.pattern.permute.xlu0 3
  %2971 = vperm.xlu0 %2970, %v111
  %v2972 = vpop.permute.xlu0 %2971
  %2974 = vset.pattern.permute.xlu0 3
  %2975 = vperm.xlu0 %2974, %v112
  %v2976 = vpop.permute.xlu0 %2975
  %2978 = vset.pattern.permute.xlu0 3
  %2979 = vperm.xlu0 %2978, %v113
  %v2980 = vpop.permute.xlu0 %2979
  %2982 = vset.pattern.permute.xlu0 3
  %2983 = vperm.xlu0 %2982, %v114
  %v2984 = vpop.permute.xlu0 %2983
  %2986 = vset.pattern.permute.xlu0 3
  %2987 = vperm.xlu0 %2986, %v115
  %v2988 = vpop.permute.xlu0 %2987
  %2990 = vset.pattern.permute.xlu0 3
  %2991 = vperm.xlu0 %2990, %v116
  %v2992 = vpop.permute.xlu0 %2991
  %2994 = vset.pattern.permute.xlu0 3
  %2995 = vperm.xlu0 %2994, %v117
  %v2996 = vpop.permute.xlu0 %2995
  %2998 = vset.pattern.permute.xlu0 3
  %2999 = vperm.xlu0 %2998, %v118
  %v3000 = vpop.permute.xlu0 %2999
  %3002 = vset.pattern.permute.xlu0 3
  %3003 = vperm.xlu0 %3002, %v119
  %v3004 = vpop.permute.xlu0 %3003
  %3006 = vset.pattern.permute.xlu0 3
  %3007 = vperm.xlu0 %3006, %v120
  %v3008 = vpop.permute.xlu0 %3007
  %3010 = vset.pattern.permute.xlu0 3
  %3011 = vperm.xlu0 %3010, %v121
  %v3012 = vpop.permute.xlu0 %3011
  %3014 = vset.pattern.permute.xlu0 3
  %3015 = vperm.xlu0 %3014, %v122
  %v3016 = vpop.permute.xlu0 %3015
  %3018 = vset.pattern.permute.xlu0 3
  %3019 = vperm.xlu0 %3018, %v123
  %v3020 = vpop.permute.xlu0 %3019
  %3022 = vset.pattern.permute.xlu0 3
  %3023 = vperm.xlu0 %3022, %v124
  %v3024 = vpop.permute.xlu0 %3023
  %3026 = vset.pattern.permute.xlu0 3
  %3027 = vperm.xlu0 %3026, %v125
  %v3028 = vpop.permute.xlu0 %3027
  %3030 = vset.pattern.permute.xlu0 3
  %3031 = vperm.xlu0 %3030, %v126
  %v3032 = vpop.permute.xlu0 %3031
  %3034 = vset.pattern.permute.xlu0 3
  %3035 = vperm.xlu0 %3034, %v127
  %v3036 = vpop.permute.xlu0 %3035
  %3038 = vset.pattern.permute.xlu0 3
  %3039 = vperm.xlu0 %3038, %v128
  %v3040 = vpop.permute.xlu0 %3039
  %3042 = vset.pattern.permute.xlu0 3
  %3043 = vperm.xlu0 %3042, %v129
  %v3044 = vpop.permute.xlu0 %3043
  %3046 = vset.pattern.permute.xlu0 3
  %3047 = vperm.xlu0 %3046, %v130
  %v3048 = vpop.permute.xlu0 %3047
  %3050 = vset.pattern.permute.xlu0 3
  %3051 = vperm.xlu0 %3050, %v131
  %v3052 = vpop.permute.xlu0 %3051
  %3054 = vset.pattern.permute.xlu0 3
  %3055 = vperm.xlu0 %3054, %v132
  %v3056 = vpop.permute.xlu0 %3055
  %3058 = vset.pattern.permute.xlu0 3
  %3059 = vperm.xlu0 %3058, %v133
  %v3060 = vpop.permute.xlu0 %3059
  %3062 = vset.pattern.permute.xlu0 3
  %3063 = vperm.xlu0 %3062, %v134
  %v3064 = vpop.permute.xlu0 %3063
  %3066 = vset.pattern.permute.xlu0 3
  %3067 = vperm.xlu0 %3066, %v135
  %v3068 = vpop.permute.xlu0 %3067
  %3070 = vset.pattern.permute.xlu0 3
  %3071 = vperm.xlu0 %3070, %v136
  %v3072 = vpop.permute.xlu0 %3071
  %3074 = vset.pattern.permute.xlu0 3
  %3075 = vperm.xlu0 %3074, %v137
  %v3076 = vpop.permute.xlu0 %3075
  %3078 = vset.pattern.permute.xlu0 3
  %3079 = vperm.xlu0 %3078, %v138
  %v3080 = vpop.permute.xlu0 %3079
  %3082 = vset.pattern.permute.xlu0 3
  %3083 = vperm.xlu0 %3082, %v139
  %v3084 = vpop.permute.xlu0 %3083
  %3086 = vset.pattern.permute.xlu0 3
  %3087 = vperm.xlu0 %3086, %v140
  %v3088 = vpop.permute.xlu0 %3087
  %3090 = vset.pattern.permute.xlu0 3
  %3091 = vperm.xlu0 %3090, %v141
  %v3092 = vpop.permute.xlu0 %3091
  %v3094 = vperm.slane %v142, 3
  %v3095 = vmul.f32 %v2584, %v3094
  %v3096 = vmul.f32 %v2588, %v3094
  %v3097 = vmul.f32 %v2592, %v3094
  %v3098 = vmul.f32 %v2596, %v3094
  %v3099 = vmul.f32 %v2600, %v3094
  %v3100 = vmul.f32 %v2604, %v3094
  %v3101 = vmul.f32 %v2608, %v3094
  %v3102 = vmul.f32 %v2612, %v3094
  %v3103 = vmul.f32 %v2616, %v3094
  %v3104 = vmul.f32 %v2620, %v3094
  %v3105 = vmul.f32 %v2624, %v3094
  %v3106 = vmul.f32 %v2628, %v3094
  %v3107 = vmul.f32 %v2632, %v3094
  %v3108 = vmul.f32 %v2636, %v3094
  %v3109 = vmul.f32 %v2640, %v3094
  %v3110 = vmul.f32 %v2644, %v3094
  %v3111 = vmul.f32 %v2648, %v3094
  %v3112 = vmul.f32 %v2652, %v3094
  %v3113 = vmul.f32 %v2656, %v3094
  %v3114 = vmul.f32 %v2660, %v3094
  %v3115 = vmul.f32 %v2664, %v3094
  %v3116 = vmul.f32 %v2668, %v3094
  %v3117 = vmul.f32 %v2672, %v3094
  %v3118 = vmul.f32 %v2676, %v3094
  %v3119 = vmul.f32 %v2680, %v3094
  %v3120 = vmul.f32 %v2684, %v3094
  %v3121 = vmul.f32 %v2688, %v3094
  %v3122 = vmul.f32 %v2692, %v3094
  %v3123 = vmul.f32 %v2696, %v3094
  %v3124 = vmul.f32 %v2700, %v3094
  %v3125 = vmul.f32 %v2704, %v3094
  %v3126 = vmul.f32 %v2708, %v3094
  %v3127 = vmul.f32 %v2712, %v3094
  %v3128 = vmul.f32 %v2716, %v3094
  %v3129 = vmul.f32 %v2720, %v3094
  %v3130 = vmul.f32 %v2724, %v3094
  %v3131 = vmul.f32 %v2728, %v3094
  %v3132 = vmul.f32 %v2732, %v3094
  %v3133 = vmul.f32 %v2736, %v3094
  %v3134 = vmul.f32 %v2740, %v3094
  %v3135 = vmul.f32 %v2744, %v3094
  %v3136 = vmul.f32 %v2748, %v3094
  %v3137 = vmul.f32 %v2752, %v3094
  %v3138 = vmul.f32 %v2756, %v3094
  %v3139 = vmul.f32 %v2760, %v3094
  %v3140 = vmul.f32 %v2764, %v3094
  %v3141 = vmul.f32 %v2768, %v3094
  %v3142 = vmul.f32 %v2772, %v3094
  %v3143 = vmul.f32 %v2776, %v3094
  %v3144 = vmul.f32 %v2780, %v3094
  %v3145 = vmul.f32 %v2784, %v3094
  %v3146 = vmul.f32 %v2788, %v3094
  %v3147 = vmul.f32 %v2792, %v3094
  %v3148 = vmul.f32 %v2796, %v3094
  %v3149 = vmul.f32 %v2800, %v3094
  %v3150 = vmul.f32 %v2804, %v3094
  %v3151 = vmul.f32 %v2808, %v3094
  %v3152 = vmul.f32 %v2812, %v3094
  %v3153 = vmul.f32 %v2816, %v3094
  %v3154 = vmul.f32 %v2820, %v3094
  %v3155 = vmul.f32 %v2824, %v3094
  %v3156 = vmul.f32 %v2828, %v3094
  %v3157 = vmul.f32 %v2832, %v3094
  %v3158 = vmul.f32 %v2836, %v3094
  %v3159 = vmul.f32 %v2840, %v3094
  %v3160 = vmul.f32 %v2844, %v3094
  %v3161 = vmul.f32 %v2848, %v3094
  %v3162 = vmul.f32 %v2852, %v3094
  %v3163 = vmul.f32 %v2856, %v3094
  %v3164 = vmul.f32 %v2860, %v3094
  %v3165 = vmul.f32 %v2864, %v3094
  %v3166 = vmul.f32 %v2868, %v3094
  %v3167 = vmul.f32 %v2872, %v3094
  %v3168 = vmul.f32 %v2876, %v3094
  %v3169 = vmul.f32 %v2880, %v3094
  %v3170 = vmul.f32 %v2884, %v3094
  %v3171 = vmul.f32 %v2888, %v3094
  %v3172 = vmul.f32 %v2892, %v3094
  %v3173 = vmul.f32 %v2896, %v3094
  %v3174 = vmul.f32 %v2900, %v3094
  %v3175 = vmul.f32 %v2904, %v3094
  %v3176 = vmul.f32 %v2908, %v3094
  %v3177 = vmul.f32 %v2912, %v3094
  %v3178 = vmul.f32 %v2916, %v3094
  %v3179 = vmul.f32 %v2920, %v3094
  %v3180 = vmul.f32 %v2924, %v3094
  %v3181 = vmul.f32 %v2928, %v3094
  %v3182 = vmul.f32 %v2932, %v3094
  %v3183 = vmul.f32 %v2936, %v3094
  %v3184 = vmul.f32 %v2940, %v3094
  %v3185 = vmul.f32 %v2944, %v3094
  %v3186 = vmul.f32 %v2948, %v3094
  %v3187 = vmul.f32 %v2952, %v3094
  %v3188 = vmul.f32 %v2956, %v3094
  %v3189 = vmul.f32 %v2960, %v3094
  %v3190 = vmul.f32 %v2964, %v3094
  %v3191 = vmul.f32 %v2968, %v3094
  %v3192 = vmul.f32 %v2972, %v3094
  %v3193 = vmul.f32 %v2976, %v3094
  %v3194 = vmul.f32 %v2980, %v3094
  %v3195 = vmul.f32 %v2984, %v3094
  %v3196 = vmul.f32 %v2988, %v3094
  %v3197 = vmul.f32 %v2992, %v3094
  %v3198 = vmul.f32 %v2996, %v3094
  %v3199 = vmul.f32 %v3000, %v3094
  %v3200 = vmul.f32 %v3004, %v3094
  %v3201 = vmul.f32 %v3008, %v3094
  %v3202 = vmul.f32 %v3012, %v3094
  %v3203 = vmul.f32 %v3016, %v3094
  %v3204 = vmul.f32 %v3020, %v3094
  %v3205 = vmul.f32 %v3024, %v3094
  %v3206 = vmul.f32 %v3028, %v3094
  %v3207 = vmul.f32 %v3032, %v3094
  %v3208 = vmul.f32 %v3036, %v3094
  %v3209 = vmul.f32 %v3040, %v3094
  %v3210 = vmul.f32 %v3044, %v3094
  %v3211 = vmul.f32 %v3048, %v3094
  %v3212 = vmul.f32 %v3052, %v3094
  %v3213 = vmul.f32 %v3056, %v3094
  %v3214 = vmul.f32 %v3060, %v3094
  %v3215 = vmul.f32 %v3064, %v3094
  %v3216 = vmul.f32 %v3068, %v3094
  %v3217 = vmul.f32 %v3072, %v3094
  %v3218 = vmul.f32 %v3076, %v3094
  %v3219 = vmul.f32 %v3080, %v3094
  %v3220 = vmul.f32 %v3084, %v3094
  %v3221 = vmul.f32 %v3088, %v3094
  %v3222 = vmul.f32 %v3092, %v3094
  %v3223 = vadd.f32 %v2454, %v3095
  %v3224 = vadd.f32 %v2455, %v3096
  %v3225 = vadd.f32 %v2456, %v3097
  %v3226 = vadd.f32 %v2457, %v3098
  %v3227 = vadd.f32 %v2458, %v3099
  %v3228 = vadd.f32 %v2459, %v3100
  %v3229 = vadd.f32 %v2460, %v3101
  %v3230 = vadd.f32 %v2461, %v3102
  %v3231 = vadd.f32 %v2462, %v3103
  %v3232 = vadd.f32 %v2463, %v3104
  %v3233 = vadd.f32 %v2464, %v3105
  %v3234 = vadd.f32 %v2465, %v3106
  %v3235 = vadd.f32 %v2466, %v3107
  %v3236 = vadd.f32 %v2467, %v3108
  %v3237 = vadd.f32 %v2468, %v3109
  %v3238 = vadd.f32 %v2469, %v3110
  %v3239 = vadd.f32 %v2470, %v3111
  %v3240 = vadd.f32 %v2471, %v3112
  %v3241 = vadd.f32 %v2472, %v3113
  %v3242 = vadd.f32 %v2473, %v3114
  %v3243 = vadd.f32 %v2474, %v3115
  %v3244 = vadd.f32 %v2475, %v3116
  %v3245 = vadd.f32 %v2476, %v3117
  %v3246 = vadd.f32 %v2477, %v3118
  %v3247 = vadd.f32 %v2478, %v3119
  %v3248 = vadd.f32 %v2479, %v3120
  %v3249 = vadd.f32 %v2480, %v3121
  %v3250 = vadd.f32 %v2481, %v3122
  %v3251 = vadd.f32 %v2482, %v3123
  %v3252 = vadd.f32 %v2483, %v3124
  %v3253 = vadd.f32 %v2484, %v3125
  %v3254 = vadd.f32 %v2485, %v3126
  %v3255 = vadd.f32 %v2486, %v3127
  %v3256 = vadd.f32 %v2487, %v3128
  %v3257 = vadd.f32 %v2488, %v3129
  %v3258 = vadd.f32 %v2489, %v3130
  %v3259 = vadd.f32 %v2490, %v3131
  %v3260 = vadd.f32 %v2491, %v3132
  %v3261 = vadd.f32 %v2492, %v3133
  %v3262 = vadd.f32 %v2493, %v3134
  %v3263 = vadd.f32 %v2494, %v3135
  %v3264 = vadd.f32 %v2495, %v3136
  %v3265 = vadd.f32 %v2496, %v3137
  %v3266 = vadd.f32 %v2497, %v3138
  %v3267 = vadd.f32 %v2498, %v3139
  %v3268 = vadd.f32 %v2499, %v3140
  %v3269 = vadd.f32 %v2500, %v3141
  %v3270 = vadd.f32 %v2501, %v3142
  %v3271 = vadd.f32 %v2502, %v3143
  %v3272 = vadd.f32 %v2503, %v3144
  %v3273 = vadd.f32 %v2504, %v3145
  %v3274 = vadd.f32 %v2505, %v3146
  %v3275 = vadd.f32 %v2506, %v3147
  %v3276 = vadd.f32 %v2507, %v3148
  %v3277 = vadd.f32 %v2508, %v3149
  %v3278 = vadd.f32 %v2509, %v3150
  %v3279 = vadd.f32 %v2510, %v3151
  %v3280 = vadd.f32 %v2511, %v3152
  %v3281 = vadd.f32 %v2512, %v3153
  %v3282 = vadd.f32 %v2513, %v3154
  %v3283 = vadd.f32 %v2514, %v3155
  %v3284 = vadd.f32 %v2515, %v3156
  %v3285 = vadd.f32 %v2516, %v3157
  %v3286 = vadd.f32 %v2517, %v3158
  %v3287 = vadd.f32 %v2518, %v3159
  %v3288 = vadd.f32 %v2519, %v3160
  %v3289 = vadd.f32 %v2520, %v3161
  %v3290 = vadd.f32 %v2521, %v3162
  %v3291 = vadd.f32 %v2522, %v3163
  %v3292 = vadd.f32 %v2523, %v3164
  %v3293 = vadd.f32 %v2524, %v3165
  %v3294 = vadd.f32 %v2525, %v3166
  %v3295 = vadd.f32 %v2526, %v3167
  %v3296 = vadd.f32 %v2527, %v3168
  %v3297 = vadd.f32 %v2528, %v3169
  %v3298 = vadd.f32 %v2529, %v3170
  %v3299 = vadd.f32 %v2530, %v3171
  %v3300 = vadd.f32 %v2531, %v3172
  %v3301 = vadd.f32 %v2532, %v3173
  %v3302 = vadd.f32 %v2533, %v3174
  %v3303 = vadd.f32 %v2534, %v3175
  %v3304 = vadd.f32 %v2535, %v3176
  %v3305 = vadd.f32 %v2536, %v3177
  %v3306 = vadd.f32 %v2537, %v3178
  %v3307 = vadd.f32 %v2538, %v3179
  %v3308 = vadd.f32 %v2539, %v3180
  %v3309 = vadd.f32 %v2540, %v3181
  %v3310 = vadd.f32 %v2541, %v3182
  %v3311 = vadd.f32 %v2542, %v3183
  %v3312 = vadd.f32 %v2543, %v3184
  %v3313 = vadd.f32 %v2544, %v3185
  %v3314 = vadd.f32 %v2545, %v3186
  %v3315 = vadd.f32 %v2546, %v3187
  %v3316 = vadd.f32 %v2547, %v3188
  %v3317 = vadd.f32 %v2548, %v3189
  %v3318 = vadd.f32 %v2549, %v3190
  %v3319 = vadd.f32 %v2550, %v3191
  %v3320 = vadd.f32 %v2551, %v3192
  %v3321 = vadd.f32 %v2552, %v3193
  %v3322 = vadd.f32 %v2553, %v3194
  %v3323 = vadd.f32 %v2554, %v3195
  %v3324 = vadd.f32 %v2555, %v3196
  %v3325 = vadd.f32 %v2556, %v3197
  %v3326 = vadd.f32 %v2557, %v3198
  %v3327 = vadd.f32 %v2558, %v3199
  %v3328 = vadd.f32 %v2559, %v3200
  %v3329 = vadd.f32 %v2560, %v3201
  %v3330 = vadd.f32 %v2561, %v3202
  %v3331 = vadd.f32 %v2562, %v3203
  %v3332 = vadd.f32 %v2563, %v3204
  %v3333 = vadd.f32 %v2564, %v3205
  %v3334 = vadd.f32 %v2565, %v3206
  %v3335 = vadd.f32 %v2566, %v3207
  %v3336 = vadd.f32 %v2567, %v3208
  %v3337 = vadd.f32 %v2568, %v3209
  %v3338 = vadd.f32 %v2569, %v3210
  %v3339 = vadd.f32 %v2570, %v3211
  %v3340 = vadd.f32 %v2571, %v3212
  %v3341 = vadd.f32 %v2572, %v3213
  %v3342 = vadd.f32 %v2573, %v3214
  %v3343 = vadd.f32 %v2574, %v3215
  %v3344 = vadd.f32 %v2575, %v3216
  %v3345 = vadd.f32 %v2576, %v3217
  %v3346 = vadd.f32 %v2577, %v3218
  %v3347 = vadd.f32 %v2578, %v3219
  %v3348 = vadd.f32 %v2579, %v3220
  %v3349 = vadd.f32 %v2580, %v3221
  %v3350 = vadd.f32 %v2581, %v3222
  %v3351 = vtanh.pop %v3223
  %v3352 = vtanh.pop %v3224
  %v3353 = vtanh.pop %v3225
  %v3354 = vtanh.pop %v3226
  %v3355 = vtanh.pop %v3227
  %v3356 = vtanh.pop %v3228
  %v3357 = vtanh.pop %v3229
  %v3358 = vtanh.pop %v3230
  %v3359 = vtanh.pop %v3231
  %v3360 = vtanh.pop %v3232
  %v3361 = vtanh.pop %v3233
  %v3362 = vtanh.pop %v3234
  %v3363 = vtanh.pop %v3235
  %v3364 = vtanh.pop %v3236
  %v3365 = vtanh.pop %v3237
  %v3366 = vtanh.pop %v3238
  %v3367 = vtanh.pop %v3239
  %v3368 = vtanh.pop %v3240
  %v3369 = vtanh.pop %v3241
  %v3370 = vtanh.pop %v3242
  %v3371 = vtanh.pop %v3243
  %v3372 = vtanh.pop %v3244
  %v3373 = vtanh.pop %v3245
  %v3374 = vtanh.pop %v3246
  %v3375 = vtanh.pop %v3247
  %v3376 = vtanh.pop %v3248
  %v3377 = vtanh.pop %v3249
  %v3378 = vtanh.pop %v3250
  %v3379 = vtanh.pop %v3251
  %v3380 = vtanh.pop %v3252
  %v3381 = vtanh.pop %v3253
  %v3382 = vtanh.pop %v3254
  %v3383 = vtanh.pop %v3255
  %v3384 = vtanh.pop %v3256
  %v3385 = vtanh.pop %v3257
  %v3386 = vtanh.pop %v3258
  %v3387 = vtanh.pop %v3259
  %v3388 = vtanh.pop %v3260
  %v3389 = vtanh.pop %v3261
  %v3390 = vtanh.pop %v3262
  %v3391 = vtanh.pop %v3263
  %v3392 = vtanh.pop %v3264
  %v3393 = vtanh.pop %v3265
  %v3394 = vtanh.pop %v3266
  %v3395 = vtanh.pop %v3267
  %v3396 = vtanh.pop %v3268
  %v3397 = vtanh.pop %v3269
  %v3398 = vtanh.pop %v3270
  %v3399 = vtanh.pop %v3271
  %v3400 = vtanh.pop %v3272
  %v3401 = vtanh.pop %v3273
  %v3402 = vtanh.pop %v3274
  %v3403 = vtanh.pop %v3275
  %v3404 = vtanh.pop %v3276
  %v3405 = vtanh.pop %v3277
  %v3406 = vtanh.pop %v3278
  %v3407 = vtanh.pop %v3279
  %v3408 = vtanh.pop %v3280
  %v3409 = vtanh.pop %v3281
  %v3410 = vtanh.pop %v3282
  %v3411 = vtanh.pop %v3283
  %v3412 = vtanh.pop %v3284
  %v3413 = vtanh.pop %v3285
  %v3414 = vtanh.pop %v3286
  %v3415 = vtanh.pop %v3287
  %v3416 = vtanh.pop %v3288
  %v3417 = vtanh.pop %v3289
  %v3418 = vtanh.pop %v3290
  %v3419 = vtanh.pop %v3291
  %v3420 = vtanh.pop %v3292
  %v3421 = vtanh.pop %v3293
  %v3422 = vtanh.pop %v3294
  %v3423 = vtanh.pop %v3295
  %v3424 = vtanh.pop %v3296
  %v3425 = vtanh.pop %v3297
  %v3426 = vtanh.pop %v3298
  %v3427 = vtanh.pop %v3299
  %v3428 = vtanh.pop %v3300
  %v3429 = vtanh.pop %v3301
  %v3430 = vtanh.pop %v3302
  %v3431 = vtanh.pop %v3303
  %v3432 = vtanh.pop %v3304
  %v3433 = vtanh.pop %v3305
  %v3434 = vtanh.pop %v3306
  %v3435 = vtanh.pop %v3307
  %v3436 = vtanh.pop %v3308
  %v3437 = vtanh.pop %v3309
  %v3438 = vtanh.pop %v3310
  %v3439 = vtanh.pop %v3311
  %v3440 = vtanh.pop %v3312
  %v3441 = vtanh.pop %v3313
  %v3442 = vtanh.pop %v3314
  %v3443 = vtanh.pop %v3315
  %v3444 = vtanh.pop %v3316
  %v3445 = vtanh.pop %v3317
  %v3446 = vtanh.pop %v3318
  %v3447 = vtanh.pop %v3319
  %v3448 = vtanh.pop %v3320
  %v3449 = vtanh.pop %v3321
  %v3450 = vtanh.pop %v3322
  %v3451 = vtanh.pop %v3323
  %v3452 = vtanh.pop %v3324
  %v3453 = vtanh.pop %v3325
  %v3454 = vtanh.pop %v3326
  %v3455 = vtanh.pop %v3327
  %v3456 = vtanh.pop %v3328
  %v3457 = vtanh.pop %v3329
  %v3458 = vtanh.pop %v3330
  %v3459 = vtanh.pop %v3331
  %v3460 = vtanh.pop %v3332
  %v3461 = vtanh.pop %v3333
  %v3462 = vtanh.pop %v3334
  %v3463 = vtanh.pop %v3335
  %v3464 = vtanh.pop %v3336
  %v3465 = vtanh.pop %v3337
  %v3466 = vtanh.pop %v3338
  %v3467 = vtanh.pop %v3339
  %v3468 = vtanh.pop %v3340
  %v3469 = vtanh.pop %v3341
  %v3470 = vtanh.pop %v3342
  %v3471 = vtanh.pop %v3343
  %v3472 = vtanh.pop %v3344
  %v3473 = vtanh.pop %v3345
  %v3474 = vtanh.pop %v3346
  %v3475 = vtanh.pop %v3347
  %v3476 = vtanh.pop %v3348
  %v3477 = vtanh.pop %v3349
  %v3478 = vtanh.pop %v3350
  %vm3479 = vcmask 261120
  %3480 = vst.msk [vmem:[%s3] sm:$0xff] %vm3479, %v3351
  %3481 = vst.msk [vmem:[%s3 + $0x8] sm:$0xff] %vm3479, %v3352
  %3482 = vst.msk [vmem:[%s3 + $0x10] sm:$0xff] %vm3479, %v3353
  %3483 = vst.msk [vmem:[%s3 + $0x18] sm:$0xff] %vm3479, %v3354
  %3484 = vst.msk [vmem:[%s3 + $0x20] sm:$0xff] %vm3479, %v3355
  %3485 = vst.msk [vmem:[%s3 + $0x28] sm:$0xff] %vm3479, %v3356
  %3486 = vst.msk [vmem:[%s3 + $0x30] sm:$0xff] %vm3479, %v3357
  %3487 = vst.msk [vmem:[%s3 + $0x38] sm:$0xff] %vm3479, %v3358
  %3488 = vst.msk [vmem:[%s3 + $0x40] sm:$0xff] %vm3479, %v3359
  %3489 = vst.msk [vmem:[%s3 + $0x48] sm:$0xff] %vm3479, %v3360
  %3490 = vst.msk [vmem:[%s3 + $0x50] sm:$0xff] %vm3479, %v3361
  %3491 = vst.msk [vmem:[%s3 + $0x58] sm:$0xff] %vm3479, %v3362
  %3492 = vst.msk [vmem:[%s3 + $0x60] sm:$0xff] %vm3479, %v3363
  %3493 = vst.msk [vmem:[%s3 + $0x68] sm:$0xff] %vm3479, %v3364
  %3494 = vst.msk [vmem:[%s3 + $0x70] sm:$0xff] %vm3479, %v3365
  %3495 = vst.msk [vmem:[%s3 + $0x78] sm:$0xff] %vm3479, %v3366
  %3496 = vst.msk [vmem:[%s3 + $0x80] sm:$0xff] %vm3479, %v3367
  %3497 = vst.msk [vmem:[%s3 + $0x88] sm:$0xff] %vm3479, %v3368
  %3498 = vst.msk [vmem:[%s3 + $0x90] sm:$0xff] %vm3479, %v3369
  %3499 = vst.msk [vmem:[%s3 + $0x98] sm:$0xff] %vm3479, %v3370
  %3500 = vst.msk [vmem:[%s3 + $0xa0] sm:$0xff] %vm3479, %v3371
  %3501 = vst.msk [vmem:[%s3 + $0xa8] sm:$0xff] %vm3479, %v3372
  %3502 = vst.msk [vmem:[%s3 + $0xb0] sm:$0xff] %vm3479, %v3373
  %3503 = vst.msk [vmem:[%s3 + $0xb8] sm:$0xff] %vm3479, %v3374
  %3504 = vst.msk [vmem:[%s3 + $0xc0] sm:$0xff] %vm3479, %v3375
  %3505 = vst.msk [vmem:[%s3 + $0xc8] sm:$0xff] %vm3479, %v3376
  %3506 = vst.msk [vmem:[%s3 + $0xd0] sm:$0xff] %vm3479, %v3377
  %3507 = vst.msk [vmem:[%s3 + $0xd8] sm:$0xff] %vm3479, %v3378
  %3508 = vst.msk [vmem:[%s3 + $0xe0] sm:$0xff] %vm3479, %v3379
  %3509 = vst.msk [vmem:[%s3 + $0xe8] sm:$0xff] %vm3479, %v3380
  %3510 = vst.msk [vmem:[%s3 + $0xf0] sm:$0xff] %vm3479, %v3381
  %3511 = vst.msk [vmem:[%s3 + $0xf8] sm:$0xff] %vm3479, %v3382
  %3512 = vst.msk [vmem:[%s3 + $0x100] sm:$0xff] %vm3479, %v3383
  %3513 = vst.msk [vmem:[%s3 + $0x108] sm:$0xff] %vm3479, %v3384
  %3514 = vst.msk [vmem:[%s3 + $0x110] sm:$0xff] %vm3479, %v3385
  %3515 = vst.msk [vmem:[%s3 + $0x118] sm:$0xff] %vm3479, %v3386
  %3516 = vst.msk [vmem:[%s3 + $0x120] sm:$0xff] %vm3479, %v3387
  %3517 = vst.msk [vmem:[%s3 + $0x128] sm:$0xff] %vm3479, %v3388
  %3518 = vst.msk [vmem:[%s3 + $0x130] sm:$0xff] %vm3479, %v3389
  %3519 = vst.msk [vmem:[%s3 + $0x138] sm:$0xff] %vm3479, %v3390
  %3520 = vst.msk [vmem:[%s3 + $0x140] sm:$0xff] %vm3479, %v3391
  %3521 = vst.msk [vmem:[%s3 + $0x148] sm:$0xff] %vm3479, %v3392
  %3522 = vst.msk [vmem:[%s3 + $0x150] sm:$0xff] %vm3479, %v3393
  %3523 = vst.msk [vmem:[%s3 + $0x158] sm:$0xff] %vm3479, %v3394
  %3524 = vst.msk [vmem:[%s3 + $0x160] sm:$0xff] %vm3479, %v3395
  %3525 = vst.msk [vmem:[%s3 + $0x168] sm:$0xff] %vm3479, %v3396
  %3526 = vst.msk [vmem:[%s3 + $0x170] sm:$0xff] %vm3479, %v3397
  %3527 = vst.msk [vmem:[%s3 + $0x178] sm:$0xff] %vm3479, %v3398
  %3528 = vst.msk [vmem:[%s3 + $0x180] sm:$0xff] %vm3479, %v3399
  %3529 = vst.msk [vmem:[%s3 + $0x188] sm:$0xff] %vm3479, %v3400
  %3530 = vst.msk [vmem:[%s3 + $0x190] sm:$0xff] %vm3479, %v3401
  %3531 = vst.msk [vmem:[%s3 + $0x198] sm:$0xff] %vm3479, %v3402
  %3532 = vst.msk [vmem:[%s3 + $0x1a0] sm:$0xff] %vm3479, %v3403
  %3533 = vst.msk [vmem:[%s3 + $0x1a8] sm:$0xff] %vm3479, %v3404
  %3534 = vst.msk [vmem:[%s3 + $0x1b0] sm:$0xff] %vm3479, %v3405
  %3535 = vst.msk [vmem:[%s3 + $0x1b8] sm:$0xff] %vm3479, %v3406
  %3536 = vst.msk [vmem:[%s3 + $0x1c0] sm:$0xff] %vm3479, %v3407
  %3537 = vst.msk [vmem:[%s3 + $0x1c8] sm:$0xff] %vm3479, %v3408
  %3538 = vst.msk [vmem:[%s3 + $0x1d0] sm:$0xff] %vm3479, %v3409
  %3539 = vst.msk [vmem:[%s3 + $0x1d8] sm:$0xff] %vm3479, %v3410
  %3540 = vst.msk [vmem:[%s3 + $0x1e0] sm:$0xff] %vm3479, %v3411
  %3541 = vst.msk [vmem:[%s3 + $0x1e8] sm:$0xff] %vm3479, %v3412
  %3542 = vst.msk [vmem:[%s3 + $0x1f0] sm:$0xff] %vm3479, %v3413
  %3543 = vst.msk [vmem:[%s3 + $0x1f8] sm:$0xff] %vm3479, %v3414
  %3544 = vst.msk [vmem:[%s3 + $0x200] sm:$0xff] %vm3479, %v3415
  %3545 = vst.msk [vmem:[%s3 + $0x208] sm:$0xff] %vm3479, %v3416
  %3546 = vst.msk [vmem:[%s3 + $0x210] sm:$0xff] %vm3479, %v3417
  %3547 = vst.msk [vmem:[%s3 + $0x218] sm:$0xff] %vm3479, %v3418
  %3548 = vst.msk [vmem:[%s3 + $0x220] sm:$0xff] %vm3479, %v3419
  %3549 = vst.msk [vmem:[%s3 + $0x228] sm:$0xff] %vm3479, %v3420
  %3550 = vst.msk [vmem:[%s3 + $0x230] sm:$0xff] %vm3479, %v3421
  %3551 = vst.msk [vmem:[%s3 + $0x238] sm:$0xff] %vm3479, %v3422
  %3552 = vst.msk [vmem:[%s3 + $0x240] sm:$0xff] %vm3479, %v3423
  %3553 = vst.msk [vmem:[%s3 + $0x248] sm:$0xff] %vm3479, %v3424
  %3554 = vst.msk [vmem:[%s3 + $0x250] sm:$0xff] %vm3479, %v3425
  %3555 = vst.msk [vmem:[%s3 + $0x258] sm:$0xff] %vm3479, %v3426
  %3556 = vst.msk [vmem:[%s3 + $0x260] sm:$0xff] %vm3479, %v3427
  %3557 = vst.msk [vmem:[%s3 + $0x268] sm:$0xff] %vm3479, %v3428
  %3558 = vst.msk [vmem:[%s3 + $0x270] sm:$0xff] %vm3479, %v3429
  %3559 = vst.msk [vmem:[%s3 + $0x278] sm:$0xff] %vm3479, %v3430
  %3560 = vst.msk [vmem:[%s3 + $0x280] sm:$0xff] %vm3479, %v3431
  %3561 = vst.msk [vmem:[%s3 + $0x288] sm:$0xff] %vm3479, %v3432
  %3562 = vst.msk [vmem:[%s3 + $0x290] sm:$0xff] %vm3479, %v3433
  %3563 = vst.msk [vmem:[%s3 + $0x298] sm:$0xff] %vm3479, %v3434
  %3564 = vst.msk [vmem:[%s3 + $0x2a0] sm:$0xff] %vm3479, %v3435
  %3565 = vst.msk [vmem:[%s3 + $0x2a8] sm:$0xff] %vm3479, %v3436
  %3566 = vst.msk [vmem:[%s3 + $0x2b0] sm:$0xff] %vm3479, %v3437
  %3567 = vst.msk [vmem:[%s3 + $0x2b8] sm:$0xff] %vm3479, %v3438
  %3568 = vst.msk [vmem:[%s3 + $0x2c0] sm:$0xff] %vm3479, %v3439
  %3569 = vst.msk [vmem:[%s3 + $0x2c8] sm:$0xff] %vm3479, %v3440
  %3570 = vst.msk [vmem:[%s3 + $0x2d0] sm:$0xff] %vm3479, %v3441
  %3571 = vst.msk [vmem:[%s3 + $0x2d8] sm:$0xff] %vm3479, %v3442
  %3572 = vst.msk [vmem:[%s3 + $0x2e0] sm:$0xff] %vm3479, %v3443
  %3573 = vst.msk [vmem:[%s3 + $0x2e8] sm:$0xff] %vm3479, %v3444
  %3574 = vst.msk [vmem:[%s3 + $0x2f0] sm:$0xff] %vm3479, %v3445
  %3575 = vst.msk [vmem:[%s3 + $0x2f8] sm:$0xff] %vm3479, %v3446
  %3576 = vst.msk [vmem:[%s3 + $0x300] sm:$0xff] %vm3479, %v3447
  %3577 = vst.msk [vmem:[%s3 + $0x308] sm:$0xff] %vm3479, %v3448
  %3578 = vst.msk [vmem:[%s3 + $0x310] sm:$0xff] %vm3479, %v3449
  %3579 = vst.msk [vmem:[%s3 + $0x318] sm:$0xff] %vm3479, %v3450
  %3580 = vst.msk [vmem:[%s3 + $0x320] sm:$0xff] %vm3479, %v3451
  %3581 = vst.msk [vmem:[%s3 + $0x328] sm:$0xff] %vm3479, %v3452
  %3582 = vst.msk [vmem:[%s3 + $0x330] sm:$0xff] %vm3479, %v3453
  %3583 = vst.msk [vmem:[%s3 + $0x338] sm:$0xff] %vm3479, %v3454
  %3584 = vst.msk [vmem:[%s3 + $0x340] sm:$0xff] %vm3479, %v3455
  %3585 = vst.msk [vmem:[%s3 + $0x348] sm:$0xff] %vm3479, %v3456
  %3586 = vst.msk [vmem:[%s3 + $0x350] sm:$0xff] %vm3479, %v3457
  %3587 = vst.msk [vmem:[%s3 + $0x358] sm:$0xff] %vm3479, %v3458
  %3588 = vst.msk [vmem:[%s3 + $0x360] sm:$0xff] %vm3479, %v3459
  %3589 = vst.msk [vmem:[%s3 + $0x368] sm:$0xff] %vm3479, %v3460
  %3590 = vst.msk [vmem:[%s3 + $0x370] sm:$0xff] %vm3479, %v3461
  %3591 = vst.msk [vmem:[%s3 + $0x378] sm:$0xff] %vm3479, %v3462
  %3592 = vst.msk [vmem:[%s3 + $0x380] sm:$0xff] %vm3479, %v3463
  %3593 = vst.msk [vmem:[%s3 + $0x388] sm:$0xff] %vm3479, %v3464
  %3594 = vst.msk [vmem:[%s3 + $0x390] sm:$0xff] %vm3479, %v3465
  %3595 = vst.msk [vmem:[%s3 + $0x398] sm:$0xff] %vm3479, %v3466
  %3596 = vst.msk [vmem:[%s3 + $0x3a0] sm:$0xff] %vm3479, %v3467
  %3597 = vst.msk [vmem:[%s3 + $0x3a8] sm:$0xff] %vm3479, %v3468
  %3598 = vst.msk [vmem:[%s3 + $0x3b0] sm:$0xff] %vm3479, %v3469
  %3599 = vst.msk [vmem:[%s3 + $0x3b8] sm:$0xff] %vm3479, %v3470
  %3600 = vst.msk [vmem:[%s3 + $0x3c0] sm:$0xff] %vm3479, %v3471
  %3601 = vst.msk [vmem:[%s3 + $0x3c8] sm:$0xff] %vm3479, %v3472
  %3602 = vst.msk [vmem:[%s3 + $0x3d0] sm:$0xff] %vm3479, %v3473
  %3603 = vst.msk [vmem:[%s3 + $0x3d8] sm:$0xff] %vm3479, %v3474
  %3604 = vst.msk [vmem:[%s3 + $0x3e0] sm:$0xff] %vm3479, %v3475
  %3605 = vst.msk [vmem:[%s3 + $0x3e8] sm:$0xff] %vm3479, %v3476
  %3606 = vst.msk [vmem:[%s3 + $0x3f0] sm:$0xff] %vm3479, %v3477
  %3607 = vst.msk [vmem:[%s3 + $0x3f8] sm:$0xff] %vm3479, %v3478
  // Predicated region
  $region14: #{tpu_custom_call.1} parent=0 // pred_check
    _
  $region15: #{tpu_custom_call.1} parent=0 // pred_check_branch
    %3609 = sbr.rel (0) target = $region17
  $region16: #{tpu_custom_call.1} parent=0 // pred_region
    _
  $region17: #{tpu_custom_call.1} parent=0 // pred_fallthru
    _
  // Predicated region
  $region18: #{tpu_custom_call.1} parent=0 // pred_check
    _
  $region19: #{tpu_custom_call.1} parent=0 // pred_check_branch
    %3611 = sbr.rel (0) target = $region21
  $region20: #{tpu_custom_call.1} parent=0 // pred_region
    _
  $region21: #{tpu_custom_call.1} parent=0 // pred_fallthru
    _

</llo_original>
